<compile_context>
chip_gen: v5e
topology: v5e:2x2
jax: 0.10.0
libtpu: 0.0.40
codegen_flags: <defaults>
</compile_context>

<pallas_src>
import functools

import jax
import jax.numpy as jnp
from jax.experimental import pallas as pl
from jax.experimental.pallas import tpu as pltpu

FEAT_DIM = 2048  # backbone output dim, fixed by the nn.Linear(2048, ...) heads


# --------------------------------------------------------------------------
# Fused Pallas kernel: backbone tile (+ReLU) and classifier accumulation
# --------------------------------------------------------------------------
def _fused_kernel(x_ref, wb_ref, wc_ref, o_ref, acc_ref):
    # Grid axis j walks the 2048-wide feature axis in tiles of tn.
    #   x_ref:  [B, K]        (full activations, resident every step)
    #   wb_ref: [K, tn]       (backbone weight tile)
    #   wc_ref: [tn, NP]      (classifier weight tile, NP = padded head total)
    #   o_ref:  [B, NP]       (padded logits, written once on the last step)
    #   acc_ref:[B, NP] f32   (persistent VMEM accumulator)
    j = pl.program_id(0)

    @pl.when(j == 0)
    def _():
        acc_ref[...] = jnp.zeros_like(acc_ref)

    # Backbone tile: [B, K] @ [K, tn] -> [B, tn], ReLU fused, f32 accumulate.
    feat = jnp.dot(x_ref[...], wb_ref[...], preferred_element_type=jnp.float32)
    feat = jnp.maximum(feat, 0.0)

    # Classifier contribution of this feature tile: [B, tn] @ [tn, NP].
    acc_ref[...] += jnp.dot(
        feat.astype(wc_ref.dtype), wc_ref[...], preferred_element_type=jnp.float32
    )

    @pl.when(j == pl.num_programs(0) - 1)
    def _():
        o_ref[...] = acc_ref[...].astype(o_ref.dtype)


def fused_backbone_heads(x, w_backbone, w_cls_pad, *, tn=512):
    """relu(x @ w_backbone) @ w_cls_pad in a single fused Pallas kernel.

    x:          [B, K]   (bf16)
    w_backbone: [K, F]   (bf16), F = 2048
    w_cls_pad:  [F, NP]  (bf16), NP a multiple of 128 (zero-padded heads)
    returns     [B, NP]  float32 logits (padded).
    """
    B, K = x.shape
    K2, F = w_backbone.shape
    F2, NP = w_cls_pad.shape
    assert K == K2 and F == F2, (x.shape, w_backbone.shape, w_cls_pad.shape)
    assert NP % 128 == 0, NP
    if F % tn != 0:
        tn = F
    grid = (F // tn,)

    flops = 2 * B * K * F + 2 * B * F * NP
    bytes_accessed = (
        x.size * x.dtype.itemsize
        + w_backbone.size * w_backbone.dtype.itemsize
        + w_cls_pad.size * w_cls_pad.dtype.itemsize
        + B * NP * 4
    )

    return pl.pallas_call(
        _fused_kernel,
        out_shape=jax.ShapeDtypeStruct((B, NP), jnp.float32),
        grid=grid,
        in_specs=[
            pl.BlockSpec((B, K), lambda j: (0, 0)),    # activations: resident
            pl.BlockSpec((K, tn), lambda j: (0, j)),   # backbone weights: tiled on F
            pl.BlockSpec((tn, NP), lambda j: (j, 0)),  # classifier weights: tiled on F
        ],
        out_specs=pl.BlockSpec((B, NP), lambda j: (0, 0)),  # accumulator output
        scratch_shapes=[pltpu.VMEM((B, NP), jnp.float32)],
        compiler_params=pltpu.CompilerParams(
            # The feature axis carries the logits accumulator -> reduction axis.
            dimension_semantics=("arbitrary",),
        ),
        cost_estimate=pl.CostEstimate(
            flops=flops, transcendentals=0, bytes_accessed=bytes_accessed
        ),
    )(x, w_backbone, w_cls_pad)


# --------------------------------------------------------------------------
# Parameter construction (deterministic, in-script)
# --------------------------------------------------------------------------
def init_params(key, in_dim, init_cls_num, inc_cls_num, task_num):
    k_b, k_c = jax.random.split(key)

    # Synthetic backbone: single linear projection in_dim -> 2048 (+ ReLU).
    w_backbone = (
        jax.random.normal(k_b, (in_dim, FEAT_DIM), jnp.float32) / jnp.sqrt(in_dim)
    ).astype(jnp.bfloat16)

    # Classifier heads: Linear(2048, n, bias=False). Stored concatenated as
    # [2048, total] so the kernel computes features @ W (== features @ W_torch.T),
    # then zero-padded on the output axis to a multiple of 128 lanes.
    cls_sizes = [init_cls_num] + [inc_cls_num] * (task_num - 1)
    total = sum(cls_sizes)
    n_pad = max(128, ((total + 127) // 128) * 128)
    w_cls = (
        jax.random.normal(k_c, (FEAT_DIM, total), jnp.float32) / jnp.sqrt(FEAT_DIM)
    ).astype(jnp.bfloat16)
    w_cls_pad = jnp.zeros((FEAT_DIM, n_pad), jnp.bfloat16).at[:, :total].set(w_cls)

    return {
        "w_backbone": w_backbone,
        "w_cls_pad": w_cls_pad,
        "cls_sizes": tuple(cls_sizes),
        "cls_total": total,
    }


# --------------------------------------------------------------------------
# Network forward (mirrors Network.forward)
# --------------------------------------------------------------------------
def network_forward(params, data, compute_input_matrix=False):
    # TODO(synk): `compute_input_matrix` only toggles activation capture inside
    # the original (injected) backbone; it does not change forward outputs here.
    del compute_input_matrix
    B = data.shape[0]
    x = data.reshape(B, -1).astype(jnp.bfloat16)  # flatten NCHW, bf16 activations

    logits_pad = fused_backbone_heads(
        x, params["w_backbone"], params["w_cls_pad"], tn=512
    )
    logits_all = logits_pad[:, : params["cls_total"]]

    logits = []
    off = 0
    for n in params["cls_sizes"]:
        logits.append(logits_all[:, off : off + n])
        off += n
    return logits


# --------------------------------------------------------------------------
if __name__ == "__main__":
    B, C, H, W = 2, 4, 16, 16
    init_cls_num, inc_cls_num, task_num = 10, 10, 3

    key = jax.random.PRNGKey(0)
    k_data, k_params = jax.random.split(key)

    data = jax.random.normal(k_data, (B, C, H, W), jnp.float32)
    params = init_params(k_params, C * H * W, init_cls_num, inc_cls_num, task_num)

    logits = network_forward(params, data)
    logits = [jax.block_until_ready(l) for l in logits]

    # Reference check (plain JAX, same bf16 params / f32 accumulate).
    x_bf16 = data.reshape(B, -1).astype(jnp.bfloat16)
    feats_ref = jnp.maximum(
        jnp.dot(x_bf16, params["w_backbone"], preferred_element_type=jnp.float32), 0.0
    )
    logits_ref_all = jnp.dot(
        feats_ref.astype(jnp.bfloat16),
        params["w_cls_pad"],
        preferred_element_type=jnp.float32,
    )[:, : params["cls_total"]]

    off = 0
    for l, n in zip(logits, params["cls_sizes"]):
        assert l.shape == (B, n), l.shape
        ref = logits_ref_all[:, off : off + n]
        off += n
        assert jnp.allclose(l, ref, atol=1e-2, rtol=1e-2), (
            jnp.max(jnp.abs(l - ref))
        )

    print("KERNEL_OK")
</pallas_src>

<mosaic_0001>
module attributes {stable_mosaic.version = 11 : i64} {
  func.func @_fused_kernel(%arg0: i32, %arg1: memref<2x1024xbf16, #tpu.memory_space<vmem>>, %arg2: memref<1024x512xbf16, #tpu.memory_space<vmem>>, %arg3: memref<512x128xbf16, #tpu.memory_space<vmem>>, %arg4: memref<2x128xf32, #tpu.memory_space<vmem>>, %arg5: memref<2x128xf32, #tpu.memory_space<vmem>>) attributes {dimension_semantics = [#tpu.dimension_semantics<arbitrary>], iteration_bounds = array<i64: 4>, scalar_prefetch = 0 : i64, scratch_operands = 1 : i64, tpu.core_type = #tpu.core_type<tc>, window_params = [{pipeline_mode = #tpu.pipeline_mode<synchronous>, transform_indices = @transform_0, window_bounds = array<i64: 2, 1024>}, {transform_indices = @transform_1, window_bounds = array<i64: 1024, 512>}, {transform_indices = @transform_2, window_bounds = array<i64: 512, 128>}, {pipeline_mode = #tpu.pipeline_mode<synchronous>, transform_indices = @transform_3, window_bounds = array<i64: 2, 128>}]} {
    %c0_i32 = arith.constant 0 : i32
    %0 = arith.cmpi eq, %arg0, %c0_i32 : i32
    %1 = arith.extui %0 : i1 to i32
    %c0_i32_0 = arith.constant 0 : i32
    %2 = arith.cmpi ne, %1, %c0_i32_0 : i32
    scf.if %2 {
      %cst_13 = arith.constant 0.000000e+00 : f32
      %17 = vector.broadcast %cst_13 : f32 to vector<2x128xf32>
      %c0_14 = arith.constant 0 : index
      %c0_15 = arith.constant 0 : index
      %18 = vector.load %arg5[%c0_14, %c0_15] : memref<2x128xf32, #tpu.memory_space<vmem>>, vector<2x128xf32>
      tpu.vector_store %arg5[%c0_14, %c0_15], %17 {strides = array<i32>} : memref<2x128xf32, #tpu.memory_space<vmem>>, vector<2x128xf32>,
    } else {
    }
    %c0 = arith.constant 0 : index
    %c0_1 = arith.constant 0 : index
    %3 = vector.load %arg1[%c0, %c0_1] : memref<2x1024xbf16, #tpu.memory_space<vmem>>, vector<2x1024xbf16>
    %c0_2 = arith.constant 0 : index
    %c0_3 = arith.constant 0 : index
    %4 = vector.load %arg2[%c0_2, %c0_3] : memref<1024x512xbf16, #tpu.memory_space<vmem>>, vector<1024x512xbf16>
    %cst = arith.constant dense<0.000000e+00> : vector<2x512xf32>
    %5 = tpu.matmul %3, %4, %cst {dimension_numbers = #tpu.dot_dimension_numbers<[1], [0], [0], [1], [0, 0, 1, 1], [], []>} : vector<2x1024xbf16>, vector<1024x512xbf16>, vector<2x512xf32> -> vector<2x512xf32>
    %cst_4 = arith.constant 0.000000e+00 : f32
    %6 = vector.broadcast %cst_4 : f32 to vector<2x512xf32>
    %7 = arith.maximumf %5, %6 : vector<2x512xf32>
    %c0_5 = arith.constant 0 : index
    %c0_6 = arith.constant 0 : index
    %8 = vector.load %arg5[%c0_5, %c0_6] : memref<2x128xf32, #tpu.memory_space<vmem>>, vector<2x128xf32>
    %9 = arith.truncf %7 : vector<2x512xf32> to vector<2x512xbf16>
    %c0_7 = arith.constant 0 : index
    %c0_8 = arith.constant 0 : index
    %10 = vector.load %arg3[%c0_7, %c0_8] : memref<512x128xbf16, #tpu.memory_space<vmem>>, vector<512x128xbf16>
    %cst_9 = arith.constant dense<0.000000e+00> : vector<2x128xf32>
    %11 = tpu.matmul %9, %10, %cst_9 {dimension_numbers = #tpu.dot_dimension_numbers<[1], [0], [0], [1], [0, 0, 1, 1], [], []>} : vector<2x512xbf16>, vector<512x128xbf16>, vector<2x128xf32> -> vector<2x128xf32>
    %12 = arith.addf %8, %11 : vector<2x128xf32>
    %c0_10 = arith.constant 0 : index
    %c0_11 = arith.constant 0 : index
    %13 = vector.load %arg5[%c0_10, %c0_11] : memref<2x128xf32, #tpu.memory_space<vmem>>, vector<2x128xf32>
    tpu.vector_store %arg5[%c0_10, %c0_11], %12 {strides = array<i32>} : memref<2x128xf32, #tpu.memory_space<vmem>>, vector<2x128xf32>,
    %c3_i32 = arith.constant 3 : i32
    %14 = arith.cmpi eq, %arg0, %c3_i32 : i32
    %15 = arith.extui %14 : i1 to i32
    %c0_i32_12 = arith.constant 0 : i32
    %16 = arith.cmpi ne, %15, %c0_i32_12 : i32
    scf.if %16 {
      %c0_13 = arith.constant 0 : index
      %c0_14 = arith.constant 0 : index
      %17 = vector.load %arg5[%c0_13, %c0_14] : memref<2x128xf32, #tpu.memory_space<vmem>>, vector<2x128xf32>
      %c0_15 = arith.constant 0 : index
      %c0_16 = arith.constant 0 : index
      %18 = vector.load %arg4[%c0_15, %c0_16] : memref<2x128xf32, #tpu.memory_space<vmem>>, vector<2x128xf32>
      tpu.vector_store %arg4[%c0_15, %c0_16], %17 {strides = array<i32>} : memref<2x128xf32, #tpu.memory_space<vmem>>, vector<2x128xf32>,
    } else {
    }
    return
  }
  func.func @transform_0(%arg0: i32) -> (i32, i32) {
    %c0_i32 = arith.constant 0 : i32
    %c0_i32_0 = arith.constant 0 : i32
    %c0_i32_1 = arith.constant 0 : i32
    return %c0_i32, %c0_i32_0 : i32, i32
  }
  func.func @transform_1(%arg0: i32) -> (i32, i32) {
    %c0_i32 = arith.constant 0 : i32
    %c0_i32_0 = arith.constant 0 : i32
    return %c0_i32, %arg0 : i32, i32
  }
  func.func @transform_2(%arg0: i32) -> (i32, i32) {
    %c0_i32 = arith.constant 0 : i32
    %c0_i32_0 = arith.constant 0 : i32
    return %arg0, %c0_i32 : i32, i32
  }
  func.func @transform_3(%arg0: i32) -> (i32, i32) {
    %c0_i32 = arith.constant 0 : i32
    %c0_i32_0 = arith.constant 0 : i32
    %c0_i32_1 = arith.constant 0 : i32
    return %c0_i32, %c0_i32_0 : i32, i32
  }
}

</mosaic_0001>

<llo_original>
// kernel: tpu_custom_call.1
$region0: #{tpu_custom_call.1}
  #allocation0 [shape = 'u32[]', space=smem, size = 0x4, offset = 0x4, fixed_abs, tag = 'smem constant byte address 0x4 - core index']
  #allocation1 [shape = 'u32[72,128]{1,0:T(1,128)}', space=vmem, size = 0x9000, scoped, tag = 'internal scratch']
  #allocation2 [shape = 'f32[2,128]{1,0:T(2,128)}', space=vmem, size = 0x400, scoped, tag = 'scratch operand']
  %s0 = inlined_call_operand.hbm [shape: bf16[2,1024], index: 0, kind: input, shape index: {}]
  %s1 = inlined_call_operand.hbm [shape: bf16[1024,2048], index: 1, kind: input, shape index: {}]
  %s2 = inlined_call_operand.hbm [shape: bf16[2048,128], index: 2, kind: input, shape index: {}]
  %s3 = inlined_call_operand.hbm [shape: f32[2,128], index: 3, kind: output, shape index: {}]
  %s4 = sld [smem:[#allocation0]]
  $region65: #{tpu_custom_call.1} parent=0
    _
  %s6 = ssub.s32 1, %s4
  %s7 = scalar_select 0, %s6, %s4
  $region1: #{tpu_custom_call.1} parent=0
    #allocation3 [shape = 'u8[4096]{0}', space=vmem, size = 0x1000, scoped, tag = 'input window, operand 0, single buffered']
    #allocation4 [shape = 's32[2]{0}', space=sflag, size = 0x8, scoped, tag = 'scoped memory for tpu_custom_call.1']
    #allocation5 [shape = 's32[2]{0}', space=sflag, size = 0x8, scoped, tag = 'scoped memory for tpu_custom_call.1']
    #allocation6 [shape = 'u8[2097152]{0}', space=vmem, size = 0x200000, scoped, tag = 'input window, operand 1']
    #allocation7 [shape = 's32[2]{0}', space=sflag, size = 0x8, scoped, tag = 'scoped memory for tpu_custom_call.1']
    #allocation8 [shape = 'u8[262144]{0}', space=vmem, size = 0x40000, scoped, tag = 'input window, operand 2']
    #allocation9 [shape = 'u8[1024]{0}', space=vmem, size = 0x400, scoped, tag = 'output window, operand 0, single buffered']
    %8 = vsyncpa [#allocation4], 0
    %9 = vsyncpa [#allocation7], 0
    %s10 = scalar_lea.sflag [#allocation7], 1
    %11 = vsyncpa %s10, 0
    %12 = vsyncpa [#allocation5], 0
    loop: start=0, step=1, limit=6
    $region2: #{tpu_custom_call.1} parent=1 // loop_pre_header
      _
    $region3: #{tpu_custom_call.1} parent=1 // loop_header
      %s14 = sphi 0, %s18
      %p15 = scmp.ge.s32.totalorder %s14, 6
      %s22 = sphi 0, %s22
      %s24 = sphi 0, %s22
      %s25 = sphi 0, %s24
      %s39 = sphi 0, %s25
      %s45 = sphi 0, %s47
      %s48 = sphi 0, %s45
      %s49 = sphi 0, %s48
      %s65 = sphi 0, %s49
      %s71 = sphi 0, %s73
      %s74 = sphi 0, %s71
      %s75 = sphi 0, %s74
      %s91 = sphi 0, %s75
      %s95 = sphi 0, %s95
      %s97 = sphi 0, %s95
      %s98 = sphi 0, %s97
      %s112 = sphi 0, %s98
    $region4: #{tpu_custom_call.1} parent=1 // loop_header_branch
      %17 = sbr.rel (%p15) target = $region8
    $region5: #{tpu_custom_call.1} parent=1 // loop_body
      %s19 = ssub.s32 %s14, 1
      %s20 = ssub.s32 %s14, 2
      %s21 = sadd.s32 %s14, 1
      %s23 = sadd.s32 %s22, 1
      %p26 = scmp.eq.s32.totalorder %s14, 3
      %p27 = scmp.ne.s32.totalorder %s22, %s24
      %p28 = scmp.eq.s32.totalorder %s14, 0
      %p29 = por %p27, %p28
      %p30 = scmp.ne.s32.totalorder %s22, %s24
      %p31 = scmp.eq.s32.totalorder %s19, 3
      %p32 = por %p30, %p31
      %p33 = scmp.ne.s32.totalorder %s24, %s25
      %p34 = scmp.eq.s32.totalorder %s19, 0
      %p35 = por %p33, %p34
      %p36 = scmp.ne.s32.totalorder %s24, %s25
      %p37 = scmp.eq.s32.totalorder %s20, 3
      %p38 = por %p36, %p37
      %p40 = scmp.ne.s32.totalorder %s25, %s39
      %p41 = scmp.eq.s32.totalorder %s20, 0
      %p42 = por %p40, %p41
      %s43 = ssub.s32 %s14, %s21
      %p44 = scmp.eq.s32.totalorder %s43, 0
      %s46 = sadd.s32 %s45, 1
      %s47 = scalar_select %p44, %s45, %s46
      %p50 = pneg %p44
      %p51 = scmp.eq.s32.totalorder %s14, 3
      %p52 = por %p50, %p51
      %p53 = scmp.ne.s32.totalorder %s45, %s48
      %p54 = scmp.eq.s32.totalorder %s14, 0
      %p55 = por %p53, %p54
      %p56 = scmp.ne.s32.totalorder %s45, %s48
      %p57 = scmp.eq.s32.totalorder %s19, 3
      %p58 = por %p56, %p57
      %p59 = scmp.ne.s32.totalorder %s48, %s49
      %p60 = scmp.eq.s32.totalorder %s19, 0
      %p61 = por %p59, %p60
      %p62 = scmp.ne.s32.totalorder %s48, %s49
      %p63 = scmp.eq.s32.totalorder %s20, 3
      %p64 = por %p62, %p63
      %p66 = scmp.ne.s32.totalorder %s49, %s65
      %p67 = scmp.eq.s32.totalorder %s20, 0
      %p68 = por %p66, %p67
      %s69 = ssub.s32 %s14, %s21
      %p70 = scmp.eq.s32.totalorder %s69, 0
      %s72 = sadd.s32 %s71, 1
      %s73 = scalar_select %p70, %s71, %s72
      %p76 = pneg %p70
      %p77 = scmp.eq.s32.totalorder %s14, 3
      %p78 = por %p76, %p77
      %p79 = scmp.ne.s32.totalorder %s71, %s74
      %p80 = scmp.eq.s32.totalorder %s14, 0
      %p81 = por %p79, %p80
      %p82 = scmp.ne.s32.totalorder %s71, %s74
      %p83 = scmp.eq.s32.totalorder %s19, 3
      %p84 = por %p82, %p83
      %p85 = scmp.ne.s32.totalorder %s74, %s75
      %p86 = scmp.eq.s32.totalorder %s19, 0
      %p87 = por %p85, %p86
      %p88 = scmp.ne.s32.totalorder %s74, %s75
      %p89 = scmp.eq.s32.totalorder %s20, 3
      %p90 = por %p88, %p89
      %p92 = scmp.ne.s32.totalorder %s75, %s91
      %p93 = scmp.eq.s32.totalorder %s20, 0
      %p94 = por %p92, %p93
      %s96 = sadd.s32 %s95, 1
      %p99 = scmp.eq.s32.totalorder %s14, 3
      %p100 = scmp.ne.s32.totalorder %s95, %s97
      %p101 = scmp.eq.s32.totalorder %s14, 0
      %p102 = por %p100, %p101
      %p103 = scmp.ne.s32.totalorder %s95, %s97
      %p104 = scmp.eq.s32.totalorder %s19, 3
      %p105 = por %p103, %p104
      %p106 = scmp.ne.s32.totalorder %s97, %s98
      %p107 = scmp.eq.s32.totalorder %s19, 0
      %p108 = por %p106, %p107
      %p109 = scmp.ne.s32.totalorder %s97, %s98
      %p110 = scmp.eq.s32.totalorder %s20, 3
      %p111 = por %p109, %p110
      %p113 = scmp.ne.s32.totalorder %s98, %s112
      %p114 = scmp.eq.s32.totalorder %s20, 0
      %p115 = por %p113, %p114
      %p116 = scmp.le.s32.totalorder 1, %s14
      %p117 = scmp.lt.s32.totalorder %s14, 5
      %p118 = pnand %p116, %p117
      %p119 = pneg %p118
      // Predicated region
      $region9: #{tpu_custom_call.1} parent=5 // pred_check
        _
      $region10: #{tpu_custom_call.1} parent=5 // pred_check_branch
        %121 = sbr.rel (%p118) target = $region12
      $region11: #{tpu_custom_call.1} parent=5 // pred_region
        %s122 = ssub.s32 %s14, 1
        // Predicated region
        $region13: #{tpu_custom_call.1} parent=11 // pred_check
          %p123 = pneg %p35
        $region14: #{tpu_custom_call.1} parent=11 // pred_check_branch
          %125 = sbr.rel (%p123) target = $region16
        $region15: #{tpu_custom_call.1} parent=11 // pred_region
          %127 = vsyncadd [#allocation4], 0
          %s129 = sshll.u32 %s0, 4
          %s130 = int_to_ptr.hbm [resolvable:$true] %s129
          %s131 = sshll.u32 [#allocation3], 4
          %s132 = int_to_ptr.vmem [resolvable:$true] %s131
          %134 = dma.hbm_to_vmem [thread:$0]  %s130, 128, %s132, [#allocation4]
        $region16: #{tpu_custom_call.1} parent=11 // pred_fallthru
          _
      $region12: #{tpu_custom_call.1} parent=5 // pred_fallthru
        _
      %p135 = scmp.lt.s32.totalorder %s14, 4
      // Predicated region
      $region17: #{tpu_custom_call.1} parent=5 // pred_check
        %p136 = pneg %p135
      $region18: #{tpu_custom_call.1} parent=5 // pred_check_branch
        %138 = sbr.rel (%p136) target = $region20
      $region19: #{tpu_custom_call.1} parent=5 // pred_region
        // Predicated region
        $region21: #{tpu_custom_call.1} parent=19 // pred_check
          %p139 = pneg %p55
        $region22: #{tpu_custom_call.1} parent=19 // pred_check_branch
          %141 = sbr.rel (%p139) target = $region24
        $region23: #{tpu_custom_call.1} parent=19 // pred_region
          %s142 = sand.u32 %s14, 1
          %s143 = scalar_lea.sflag [#allocation7], %s142
          %s144 = sand.u32 %s45, 1
          %s145 = smul.addr %s144, 2048
          %s146 = scalar_lea.vmem [#allocation6], %s145
          %s147 = smul.u32 4, %s14
          %149 = vsyncadd %s143, 0
          %s150 = smul.addr %s147, 4
          %s151 = scalar_lea.hbm %s1, %s150
          %s152 = sshll.u32 %s151, 4
          %s153 = int_to_ptr.hbm [resolvable:$true] %s152
          %s154 = sshll.u32 %s146, 4
          %s155 = int_to_ptr.vmem [resolvable:$true] %s154
          %160 = dma.hbm_to_vmem [thread:$0]  %s153, 32768, %s155, %s143, 1024, 256, 16
        $region24: #{tpu_custom_call.1} parent=19 // pred_fallthru
          _
        // Predicated region
        $region25: #{tpu_custom_call.1} parent=19 // pred_check
          %p161 = pneg %p81
        $region26: #{tpu_custom_call.1} parent=19 // pred_check_branch
          %163 = sbr.rel (%p161) target = $region28
        $region27: #{tpu_custom_call.1} parent=19 // pred_region
          %s164 = sand.u32 %s14, 1
          %s165 = scalar_lea.sflag [#allocation7], %s164
          %s166 = sand.u32 %s71, 1
          %s167 = smul.addr %s166, 256
          %s168 = scalar_lea.vmem [#allocation8], %s167
          %s169 = smul.u32 64, %s14
          %171 = vsyncadd %s165, 0
          %s172 = smul.addr %s169, 4
          %s173 = scalar_lea.hbm %s2, %s172
          %s174 = sshll.u32 %s173, 4
          %s175 = int_to_ptr.hbm [resolvable:$true] %s174
          %s176 = sshll.u32 %s168, 4
          %s177 = int_to_ptr.vmem [resolvable:$true] %s176
          %182 = dma.hbm_to_vmem [thread:$0]  %s175, 4096, %s177, %s165, 64, 64, 4
        $region28: #{tpu_custom_call.1} parent=19 // pred_fallthru
          _
      $region20: #{tpu_custom_call.1} parent=5 // pred_fallthru
        _
      %p183 = scmp.le.s32.totalorder 1, %s14
      %p184 = scmp.lt.s32.totalorder %s14, 5
      %p185 = pnand %p183, %p184
      %p186 = pneg %p185
      // Predicated region
      $region29: #{tpu_custom_call.1} parent=5 // pred_check
        _
      $region30: #{tpu_custom_call.1} parent=5 // pred_check_branch
        %188 = sbr.rel (%p185) target = $region32
      $region31: #{tpu_custom_call.1} parent=5 // pred_region
        %s189 = ssub.s32 %s14, 1
        // Predicated region
        $region33: #{tpu_custom_call.1} parent=31 // pred_check
          %p190 = pneg %p35
        $region34: #{tpu_custom_call.1} parent=31 // pred_check_branch
          %192 = sbr.rel (%p190) target = $region36
        $region35: #{tpu_custom_call.1} parent=31 // pred_region
          %194 = dma.done [#allocation4], 128
        $region36: #{tpu_custom_call.1} parent=31 // pred_fallthru
          _
        %s195 = sand.u32 %s19, 1
        %s196 = scalar_lea.sflag [#allocation7], %s195
        %s197 = sand.u32 %s48, 1
        %s198 = smul.addr %s197, 2048
        %s199 = scalar_lea.vmem [#allocation6], %s198
        // Predicated region
        $region37: #{tpu_custom_call.1} parent=31 // pred_check
          %p200 = pneg %p61
        $region38: #{tpu_custom_call.1} parent=31 // pred_check_branch
          %202 = sbr.rel (%p200) target = $region40
        $region39: #{tpu_custom_call.1} parent=31 // pred_region
          %204 = dma.done %s196, 32768
        $region40: #{tpu_custom_call.1} parent=31 // pred_fallthru
          _
        %s205 = sand.u32 %s19, 1
        %s206 = scalar_lea.sflag [#allocation7], %s205
        %s207 = sand.u32 %s74, 1
        %s208 = smul.addr %s207, 256
        %s209 = scalar_lea.vmem [#allocation8], %s208
        // Predicated region
        $region41: #{tpu_custom_call.1} parent=31 // pred_check
          %p210 = pneg %p87
        $region42: #{tpu_custom_call.1} parent=31 // pred_check_branch
          %212 = sbr.rel (%p210) target = $region44
        $region43: #{tpu_custom_call.1} parent=31 // pred_region
          %214 = dma.done %s206, 4096
        $region44: #{tpu_custom_call.1} parent=31 // pred_fallthru
          _
        %p215 = pneg %p35
        %p216 = pneg %p32
        %s217 = sand.u32 %s19, 1
        %s218 = scalar_lea.sflag [#allocation7], %s217
        %s219 = sand.u32 %s48, 1
        %s220 = smul.addr %s219, 2048
        %s221 = scalar_lea.vmem [#allocation6], %s220
        %p222 = pneg %p61
        %p223 = pneg %p58
        %s224 = sand.u32 %s19, 1
        %s225 = scalar_lea.sflag [#allocation7], %s224
        %s226 = sand.u32 %s74, 1
        %s227 = smul.addr %s226, 256
        %s228 = scalar_lea.vmem [#allocation8], %s227
        %p229 = pneg %p87
        %p230 = pneg %p84
        %p231 = pneg %p108
        %p232 = pneg %p105
        %s233 = smul.u32 4, %s19
        %s234 = smul.u32 64, %s19
        %p235 = scmp.eq.s32.totalorder %s19, 0
        // Predicated region
        $region45: #{tpu_custom_call.1} parent=31 // pred_check
          %p236 = pneg %p235
        $region46: #{tpu_custom_call.1} parent=31 // pred_check_branch
          %238 = sbr.rel (%p236) target = $region48
        $region47: #{tpu_custom_call.1} parent=31 // pred_region
          %239 = vst [vmem:[#allocation2] sm:$0x3] 0.0
        $region48: #{tpu_custom_call.1} parent=31 // pred_fallthru
          _
        %v240 = vld [vmem:[#allocation3] sm:$0xff]
        %v241 = vld [vmem:[%s199] sm:$0xff]
        %v242 = vld [vmem:[%s199 + $0x8] sm:$0xff]
        %v243 = vld [vmem:[%s199 + $0x10] sm:$0xff]
        %v244 = vld [vmem:[%s199 + $0x18] sm:$0xff]
        %v245 = vld [vmem:[%s199 + $0x20] sm:$0xff]
        %v246 = vld [vmem:[%s199 + $0x28] sm:$0xff]
        %v247 = vld [vmem:[%s199 + $0x30] sm:$0xff]
        %v248 = vld [vmem:[%s199 + $0x38] sm:$0xff]
        %v249 = vld [vmem:[%s199 + $0x40] sm:$0xff]
        %v250 = vld [vmem:[%s199 + $0x48] sm:$0xff]
        %v251 = vld [vmem:[%s199 + $0x50] sm:$0xff]
        %v252 = vld [vmem:[%s199 + $0x58] sm:$0xff]
        %v253 = vld [vmem:[%s199 + $0x60] sm:$0xff]
        %v254 = vld [vmem:[%s199 + $0x68] sm:$0xff]
        %v255 = vld [vmem:[%s199 + $0x70] sm:$0xff]
        %v256 = vld [vmem:[%s199 + $0x78] sm:$0xff]
        %v257 = vld [vmem:[%s199 + $0x80] sm:$0xff]
        %v258 = vld [vmem:[%s199 + $0x88] sm:$0xff]
        %v259 = vld [vmem:[%s199 + $0x90] sm:$0xff]
        %v260 = vld [vmem:[%s199 + $0x98] sm:$0xff]
        %v261 = vld [vmem:[%s199 + $0xa0] sm:$0xff]
        %v262 = vld [vmem:[%s199 + $0xa8] sm:$0xff]
        %v263 = vld [vmem:[%s199 + $0xb0] sm:$0xff]
        %v264 = vld [vmem:[%s199 + $0xb8] sm:$0xff]
        %v265 = vld [vmem:[%s199 + $0xc0] sm:$0xff]
        %v266 = vld [vmem:[%s199 + $0xc8] sm:$0xff]
        %v267 = vld [vmem:[%s199 + $0xd0] sm:$0xff]
        %v268 = vld [vmem:[%s199 + $0xd8] sm:$0xff]
        %v269 = vld [vmem:[%s199 + $0xe0] sm:$0xff]
        %v270 = vld [vmem:[%s199 + $0xe8] sm:$0xff]
        %v271 = vld [vmem:[%s199 + $0xf0] sm:$0xff]
        %v272 = vld [vmem:[%s199 + $0xf8] sm:$0xff]
        %v273 = vld [vmem:[%s199 + $0x100] sm:$0xff]
        %v274 = vld [vmem:[%s199 + $0x108] sm:$0xff]
        %v275 = vld [vmem:[%s199 + $0x110] sm:$0xff]
        %v276 = vld [vmem:[%s199 + $0x118] sm:$0xff]
        %v277 = vld [vmem:[%s199 + $0x120] sm:$0xff]
        %v278 = vld [vmem:[%s199 + $0x128] sm:$0xff]
        %v279 = vld [vmem:[%s199 + $0x130] sm:$0xff]
        %v280 = vld [vmem:[%s199 + $0x138] sm:$0xff]
        %v281 = vld [vmem:[%s199 + $0x140] sm:$0xff]
        %v282 = vld [vmem:[%s199 + $0x148] sm:$0xff]
        %v283 = vld [vmem:[%s199 + $0x150] sm:$0xff]
        %v284 = vld [vmem:[%s199 + $0x158] sm:$0xff]
        %v285 = vld [vmem:[%s199 + $0x160] sm:$0xff]
        %v286 = vld [vmem:[%s199 + $0x168] sm:$0xff]
        %v287 = vld [vmem:[%s199 + $0x170] sm:$0xff]
        %v288 = vld [vmem:[%s199 + $0x178] sm:$0xff]
        %v289 = vld [vmem:[%s199 + $0x180] sm:$0xff]
        %v290 = vld [vmem:[%s199 + $0x188] sm:$0xff]
        %v291 = vld [vmem:[%s199 + $0x190] sm:$0xff]
        %v292 = vld [vmem:[%s199 + $0x198] sm:$0xff]
        %v293 = vld [vmem:[%s199 + $0x1a0] sm:$0xff]
        %v294 = vld [vmem:[%s199 + $0x1a8] sm:$0xff]
        %v295 = vld [vmem:[%s199 + $0x1b0] sm:$0xff]
        %v296 = vld [vmem:[%s199 + $0x1b8] sm:$0xff]
        %v297 = vld [vmem:[%s199 + $0x1c0] sm:$0xff]
        %v298 = vld [vmem:[%s199 + $0x1c8] sm:$0xff]
        %v299 = vld [vmem:[%s199 + $0x1d0] sm:$0xff]
        %v300 = vld [vmem:[%s199 + $0x1d8] sm:$0xff]
        %v301 = vld [vmem:[%s199 + $0x1e0] sm:$0xff]
        %v302 = vld [vmem:[%s199 + $0x1e8] sm:$0xff]
        %v303 = vld [vmem:[%s199 + $0x1f0] sm:$0xff]
        %v304 = vld [vmem:[%s199 + $0x1f8] sm:$0xff]
        %v305 = vld [vmem:[%s199 + $0x200] sm:$0xff]
        %v306 = vld [vmem:[%s199 + $0x208] sm:$0xff]
        %v307 = vld [vmem:[%s199 + $0x210] sm:$0xff]
        %v308 = vld [vmem:[%s199 + $0x218] sm:$0xff]
        %v309 = vld [vmem:[%s199 + $0x220] sm:$0xff]
        %v310 = vld [vmem:[%s199 + $0x228] sm:$0xff]
        %v311 = vld [vmem:[%s199 + $0x230] sm:$0xff]
        %v312 = vld [vmem:[%s199 + $0x238] sm:$0xff]
        %v313 = vld [vmem:[%s199 + $0x240] sm:$0xff]
        %v314 = vld [vmem:[%s199 + $0x248] sm:$0xff]
        %v315 = vld [vmem:[%s199 + $0x250] sm:$0xff]
        %v316 = vld [vmem:[%s199 + $0x258] sm:$0xff]
        %v317 = vld [vmem:[%s199 + $0x260] sm:$0xff]
        %v318 = vld [vmem:[%s199 + $0x268] sm:$0xff]
        %v319 = vld [vmem:[%s199 + $0x270] sm:$0xff]
        %v320 = vld [vmem:[%s199 + $0x278] sm:$0xff]
        %v321 = vld [vmem:[%s199 + $0x280] sm:$0xff]
        %v322 = vld [vmem:[%s199 + $0x288] sm:$0xff]
        %v323 = vld [vmem:[%s199 + $0x290] sm:$0xff]
        %v324 = vld [vmem:[%s199 + $0x298] sm:$0xff]
        %v325 = vld [vmem:[%s199 + $0x2a0] sm:$0xff]
        %v326 = vld [vmem:[%s199 + $0x2a8] sm:$0xff]
        %v327 = vld [vmem:[%s199 + $0x2b0] sm:$0xff]
        %v328 = vld [vmem:[%s199 + $0x2b8] sm:$0xff]
        %v329 = vld [vmem:[%s199 + $0x2c0] sm:$0xff]
        %v330 = vld [vmem:[%s199 + $0x2c8] sm:$0xff]
        %v331 = vld [vmem:[%s199 + $0x2d0] sm:$0xff]
        %v332 = vld [vmem:[%s199 + $0x2d8] sm:$0xff]
        %v333 = vld [vmem:[%s199 + $0x2e0] sm:$0xff]
        %v334 = vld [vmem:[%s199 + $0x2e8] sm:$0xff]
        %v335 = vld [vmem:[%s199 + $0x2f0] sm:$0xff]
        %v336 = vld [vmem:[%s199 + $0x2f8] sm:$0xff]
        %v337 = vld [vmem:[%s199 + $0x300] sm:$0xff]
        %v338 = vld [vmem:[%s199 + $0x308] sm:$0xff]
        %v339 = vld [vmem:[%s199 + $0x310] sm:$0xff]
        %v340 = vld [vmem:[%s199 + $0x318] sm:$0xff]
        %v341 = vld [vmem:[%s199 + $0x320] sm:$0xff]
        %v342 = vld [vmem:[%s199 + $0x328] sm:$0xff]
        %v343 = vld [vmem:[%s199 + $0x330] sm:$0xff]
        %v344 = vld [vmem:[%s199 + $0x338] sm:$0xff]
        %v345 = vld [vmem:[%s199 + $0x340] sm:$0xff]
        %v346 = vld [vmem:[%s199 + $0x348] sm:$0xff]
        %v347 = vld [vmem:[%s199 + $0x350] sm:$0xff]
        %v348 = vld [vmem:[%s199 + $0x358] sm:$0xff]
        %v349 = vld [vmem:[%s199 + $0x360] sm:$0xff]
        %v350 = vld [vmem:[%s199 + $0x368] sm:$0xff]
        %v351 = vld [vmem:[%s199 + $0x370] sm:$0xff]
        %v352 = vld [vmem:[%s199 + $0x378] sm:$0xff]
        %v353 = vld [vmem:[%s199 + $0x380] sm:$0xff]
        %v354 = vld [vmem:[%s199 + $0x388] sm:$0xff]
        %v355 = vld [vmem:[%s199 + $0x390] sm:$0xff]
        %v356 = vld [vmem:[%s199 + $0x398] sm:$0xff]
        %v357 = vld [vmem:[%s199 + $0x3a0] sm:$0xff]
        %v358 = vld [vmem:[%s199 + $0x3a8] sm:$0xff]
        %v359 = vld [vmem:[%s199 + $0x3b0] sm:$0xff]
        %v360 = vld [vmem:[%s199 + $0x3b8] sm:$0xff]
        %v361 = vld [vmem:[%s199 + $0x3c0] sm:$0xff]
        %v362 = vld [vmem:[%s199 + $0x3c8] sm:$0xff]
        %v363 = vld [vmem:[%s199 + $0x3d0] sm:$0xff]
        %v364 = vld [vmem:[%s199 + $0x3d8] sm:$0xff]
        %v365 = vld [vmem:[%s199 + $0x3e0] sm:$0xff]
        %v366 = vld [vmem:[%s199 + $0x3e8] sm:$0xff]
        %v367 = vld [vmem:[%s199 + $0x3f0] sm:$0xff]
        %v368 = vld [vmem:[%s199 + $0x3f8] sm:$0xff]
        %v369 = vld [vmem:[%s199 + $0x400] sm:$0xff]
        %v370 = vld [vmem:[%s199 + $0x408] sm:$0xff]
        %v371 = vld [vmem:[%s199 + $0x410] sm:$0xff]
        %v372 = vld [vmem:[%s199 + $0x418] sm:$0xff]
        %v373 = vld [vmem:[%s199 + $0x420] sm:$0xff]
        %v374 = vld [vmem:[%s199 + $0x428] sm:$0xff]
        %v375 = vld [vmem:[%s199 + $0x430] sm:$0xff]
        %v376 = vld [vmem:[%s199 + $0x438] sm:$0xff]
        %v377 = vld [vmem:[%s199 + $0x440] sm:$0xff]
        %v378 = vld [vmem:[%s199 + $0x448] sm:$0xff]
        %v379 = vld [vmem:[%s199 + $0x450] sm:$0xff]
        %v380 = vld [vmem:[%s199 + $0x458] sm:$0xff]
        %v381 = vld [vmem:[%s199 + $0x460] sm:$0xff]
        %v382 = vld [vmem:[%s199 + $0x468] sm:$0xff]
        %v383 = vld [vmem:[%s199 + $0x470] sm:$0xff]
        %v384 = vld [vmem:[%s199 + $0x478] sm:$0xff]
        %v385 = vld [vmem:[%s199 + $0x480] sm:$0xff]
        %v386 = vld [vmem:[%s199 + $0x488] sm:$0xff]
        %v387 = vld [vmem:[%s199 + $0x490] sm:$0xff]
        %v388 = vld [vmem:[%s199 + $0x498] sm:$0xff]
        %v389 = vld [vmem:[%s199 + $0x4a0] sm:$0xff]
        %v390 = vld [vmem:[%s199 + $0x4a8] sm:$0xff]
        %v391 = vld [vmem:[%s199 + $0x4b0] sm:$0xff]
        %v392 = vld [vmem:[%s199 + $0x4b8] sm:$0xff]
        %v393 = vld [vmem:[%s199 + $0x4c0] sm:$0xff]
        %v394 = vld [vmem:[%s199 + $0x4c8] sm:$0xff]
        %v395 = vld [vmem:[%s199 + $0x4d0] sm:$0xff]
        %v396 = vld [vmem:[%s199 + $0x4d8] sm:$0xff]
        %v397 = vld [vmem:[%s199 + $0x4e0] sm:$0xff]
        %v398 = vld [vmem:[%s199 + $0x4e8] sm:$0xff]
        %v399 = vld [vmem:[%s199 + $0x4f0] sm:$0xff]
        %v400 = vld [vmem:[%s199 + $0x4f8] sm:$0xff]
        %v401 = vld [vmem:[%s199 + $0x500] sm:$0xff]
        %v402 = vld [vmem:[%s199 + $0x508] sm:$0xff]
        %v403 = vld [vmem:[%s199 + $0x510] sm:$0xff]
        %v404 = vld [vmem:[%s199 + $0x518] sm:$0xff]
        %v405 = vld [vmem:[%s199 + $0x520] sm:$0xff]
        %v406 = vld [vmem:[%s199 + $0x528] sm:$0xff]
        %v407 = vld [vmem:[%s199 + $0x530] sm:$0xff]
        %v408 = vld [vmem:[%s199 + $0x538] sm:$0xff]
        %v409 = vld [vmem:[%s199 + $0x540] sm:$0xff]
        %v410 = vld [vmem:[%s199 + $0x548] sm:$0xff]
        %v411 = vld [vmem:[%s199 + $0x550] sm:$0xff]
        %v412 = vld [vmem:[%s199 + $0x558] sm:$0xff]
        %v413 = vld [vmem:[%s199 + $0x560] sm:$0xff]
        %v414 = vld [vmem:[%s199 + $0x568] sm:$0xff]
        %v415 = vld [vmem:[%s199 + $0x570] sm:$0xff]
        %v416 = vld [vmem:[%s199 + $0x578] sm:$0xff]
        %v417 = vld [vmem:[%s199 + $0x580] sm:$0xff]
        %v418 = vld [vmem:[%s199 + $0x588] sm:$0xff]
        %v419 = vld [vmem:[%s199 + $0x590] sm:$0xff]
        %v420 = vld [vmem:[%s199 + $0x598] sm:$0xff]
        %v421 = vld [vmem:[%s199 + $0x5a0] sm:$0xff]
        %v422 = vld [vmem:[%s199 + $0x5a8] sm:$0xff]
        %v423 = vld [vmem:[%s199 + $0x5b0] sm:$0xff]
        %v424 = vld [vmem:[%s199 + $0x5b8] sm:$0xff]
        %v425 = vld [vmem:[%s199 + $0x5c0] sm:$0xff]
        %v426 = vld [vmem:[%s199 + $0x5c8] sm:$0xff]
        %v427 = vld [vmem:[%s199 + $0x5d0] sm:$0xff]
        %v428 = vld [vmem:[%s199 + $0x5d8] sm:$0xff]
        %v429 = vld [vmem:[%s199 + $0x5e0] sm:$0xff]
        %v430 = vld [vmem:[%s199 + $0x5e8] sm:$0xff]
        %v431 = vld [vmem:[%s199 + $0x5f0] sm:$0xff]
        %v432 = vld [vmem:[%s199 + $0x5f8] sm:$0xff]
        %v433 = vld [vmem:[%s199 + $0x600] sm:$0xff]
        %v434 = vld [vmem:[%s199 + $0x608] sm:$0xff]
        %v435 = vld [vmem:[%s199 + $0x610] sm:$0xff]
        %v436 = vld [vmem:[%s199 + $0x618] sm:$0xff]
        %v437 = vld [vmem:[%s199 + $0x620] sm:$0xff]
        %v438 = vld [vmem:[%s199 + $0x628] sm:$0xff]
        %v439 = vld [vmem:[%s199 + $0x630] sm:$0xff]
        %v440 = vld [vmem:[%s199 + $0x638] sm:$0xff]
        %v441 = vld [vmem:[%s199 + $0x640] sm:$0xff]
        %v442 = vld [vmem:[%s199 + $0x648] sm:$0xff]
        %v443 = vld [vmem:[%s199 + $0x650] sm:$0xff]
        %v444 = vld [vmem:[%s199 + $0x658] sm:$0xff]
        %v445 = vld [vmem:[%s199 + $0x660] sm:$0xff]
        %v446 = vld [vmem:[%s199 + $0x668] sm:$0xff]
        %v447 = vld [vmem:[%s199 + $0x670] sm:$0xff]
        %v448 = vld [vmem:[%s199 + $0x678] sm:$0xff]
        %v449 = vld [vmem:[%s199 + $0x680] sm:$0xff]
        %v450 = vld [vmem:[%s199 + $0x688] sm:$0xff]
        %v451 = vld [vmem:[%s199 + $0x690] sm:$0xff]
        %v452 = vld [vmem:[%s199 + $0x698] sm:$0xff]
        %v453 = vld [vmem:[%s199 + $0x6a0] sm:$0xff]
        %v454 = vld [vmem:[%s199 + $0x6a8] sm:$0xff]
        %v455 = vld [vmem:[%s199 + $0x6b0] sm:$0xff]
        %v456 = vld [vmem:[%s199 + $0x6b8] sm:$0xff]
        %v457 = vld [vmem:[%s199 + $0x6c0] sm:$0xff]
        %v458 = vld [vmem:[%s199 + $0x6c8] sm:$0xff]
        %v459 = vld [vmem:[%s199 + $0x6d0] sm:$0xff]
        %v460 = vld [vmem:[%s199 + $0x6d8] sm:$0xff]
        %v461 = vld [vmem:[%s199 + $0x6e0] sm:$0xff]
        %v462 = vld [vmem:[%s199 + $0x6e8] sm:$0xff]
        %v463 = vld [vmem:[%s199 + $0x6f0] sm:$0xff]
        %v464 = vld [vmem:[%s199 + $0x6f8] sm:$0xff]
        %v465 = vld [vmem:[%s199 + $0x700] sm:$0xff]
        %v466 = vld [vmem:[%s199 + $0x708] sm:$0xff]
        %v467 = vld [vmem:[%s199 + $0x710] sm:$0xff]
        %v468 = vld [vmem:[%s199 + $0x718] sm:$0xff]
        %v469 = vld [vmem:[%s199 + $0x720] sm:$0xff]
        %v470 = vld [vmem:[%s199 + $0x728] sm:$0xff]
        %v471 = vld [vmem:[%s199 + $0x730] sm:$0xff]
        %v472 = vld [vmem:[%s199 + $0x738] sm:$0xff]
        %v473 = vld [vmem:[%s199 + $0x740] sm:$0xff]
        %v474 = vld [vmem:[%s199 + $0x748] sm:$0xff]
        %v475 = vld [vmem:[%s199 + $0x750] sm:$0xff]
        %v476 = vld [vmem:[%s199 + $0x758] sm:$0xff]
        %v477 = vld [vmem:[%s199 + $0x760] sm:$0xff]
        %v478 = vld [vmem:[%s199 + $0x768] sm:$0xff]
        %v479 = vld [vmem:[%s199 + $0x770] sm:$0xff]
        %v480 = vld [vmem:[%s199 + $0x778] sm:$0xff]
        %v481 = vld [vmem:[%s199 + $0x780] sm:$0xff]
        %v482 = vld [vmem:[%s199 + $0x788] sm:$0xff]
        %v483 = vld [vmem:[%s199 + $0x790] sm:$0xff]
        %v484 = vld [vmem:[%s199 + $0x798] sm:$0xff]
        %v485 = vld [vmem:[%s199 + $0x7a0] sm:$0xff]
        %v486 = vld [vmem:[%s199 + $0x7a8] sm:$0xff]
        %v487 = vld [vmem:[%s199 + $0x7b0] sm:$0xff]
        %v488 = vld [vmem:[%s199 + $0x7b8] sm:$0xff]
        %v489 = vld [vmem:[%s199 + $0x7c0] sm:$0xff]
        %v490 = vld [vmem:[%s199 + $0x7c8] sm:$0xff]
        %v491 = vld [vmem:[%s199 + $0x7d0] sm:$0xff]
        %v492 = vld [vmem:[%s199 + $0x7d8] sm:$0xff]
        %v493 = vld [vmem:[%s199 + $0x7e0] sm:$0xff]
        %v494 = vld [vmem:[%s199 + $0x7e8] sm:$0xff]
        %v495 = vld [vmem:[%s199 + $0x7f0] sm:$0xff]
        %v496 = vld [vmem:[%s199 + $0x7f8] sm:$0xff]
        %498 = vst [vmem:[#allocation1] ss:$9 sm:$0xff] %v240
        %v499 = vld [vmem:[#allocation1] sm:$0xff]
        %v500 = vld [vmem:[#allocation1 + $0x9] sm:$0xff]
        %v501 = vld [vmem:[#allocation1 + $0x12] sm:$0xff]
        %v502 = vld [vmem:[#allocation1 + $0x1b] sm:$0xff]
        %v503 = vld [vmem:[#allocation1 + $0x24] sm:$0xff]
        %v504 = vld [vmem:[#allocation1 + $0x2d] sm:$0xff]
        %v505 = vld [vmem:[#allocation1 + $0x36] sm:$0xff]
        %v506 = vld [vmem:[#allocation1 + $0x3f] sm:$0xff]
        %v771 = vunpack.c.l.b16 %v241
        %v772 = vunpack.c.h.b16 %v241
        %v773 = vunpack.c.l.b16 %v242
        %v774 = vunpack.c.h.b16 %v242
        %v775 = vunpack.c.l.b16 %v243
        %v776 = vunpack.c.h.b16 %v243
        %v777 = vunpack.c.l.b16 %v244
        %v778 = vunpack.c.h.b16 %v244
        %v779 = vunpack.c.l.b16 %v245
        %v780 = vunpack.c.h.b16 %v245
        %v781 = vunpack.c.l.b16 %v246
        %v782 = vunpack.c.h.b16 %v246
        %v783 = vunpack.c.l.b16 %v247
        %v784 = vunpack.c.h.b16 %v247
        %v785 = vunpack.c.l.b16 %v248
        %v786 = vunpack.c.h.b16 %v248
        %v787 = vunpack.c.l.b16 %v249
        %v788 = vunpack.c.h.b16 %v249
        %v789 = vunpack.c.l.b16 %v250
        %v790 = vunpack.c.h.b16 %v250
        %v791 = vunpack.c.l.b16 %v251
        %v792 = vunpack.c.h.b16 %v251
        %v793 = vunpack.c.l.b16 %v252
        %v794 = vunpack.c.h.b16 %v252
        %v795 = vunpack.c.l.b16 %v253
        %v796 = vunpack.c.h.b16 %v253
        %v797 = vunpack.c.l.b16 %v254
        %v798 = vunpack.c.h.b16 %v254
        %v799 = vunpack.c.l.b16 %v255
        %v800 = vunpack.c.h.b16 %v255
        %v801 = vunpack.c.l.b16 %v256
        %v802 = vunpack.c.h.b16 %v256
        %v803 = vunpack.c.l.b16 %v257
        %v804 = vunpack.c.h.b16 %v257
        %v805 = vunpack.c.l.b16 %v258
        %v806 = vunpack.c.h.b16 %v258
        %v807 = vunpack.c.l.b16 %v259
        %v808 = vunpack.c.h.b16 %v259
        %v809 = vunpack.c.l.b16 %v260
        %v810 = vunpack.c.h.b16 %v260
        %v811 = vunpack.c.l.b16 %v261
        %v812 = vunpack.c.h.b16 %v261
        %v813 = vunpack.c.l.b16 %v262
        %v814 = vunpack.c.h.b16 %v262
        %v815 = vunpack.c.l.b16 %v263
        %v816 = vunpack.c.h.b16 %v263
        %v817 = vunpack.c.l.b16 %v264
        %v818 = vunpack.c.h.b16 %v264
        %v819 = vunpack.c.l.b16 %v265
        %v820 = vunpack.c.h.b16 %v265
        %v821 = vunpack.c.l.b16 %v266
        %v822 = vunpack.c.h.b16 %v266
        %v823 = vunpack.c.l.b16 %v267
        %v824 = vunpack.c.h.b16 %v267
        %v825 = vunpack.c.l.b16 %v268
        %v826 = vunpack.c.h.b16 %v268
        %v827 = vunpack.c.l.b16 %v269
        %v828 = vunpack.c.h.b16 %v269
        %v829 = vunpack.c.l.b16 %v270
        %v830 = vunpack.c.h.b16 %v270
        %v831 = vunpack.c.l.b16 %v271
        %v832 = vunpack.c.h.b16 %v271
        %v833 = vunpack.c.l.b16 %v272
        %v834 = vunpack.c.h.b16 %v272
        %v835 = vunpack.c.l.b16 %v273
        %v836 = vunpack.c.h.b16 %v273
        %v837 = vunpack.c.l.b16 %v274
        %v838 = vunpack.c.h.b16 %v274
        %v839 = vunpack.c.l.b16 %v275
        %v840 = vunpack.c.h.b16 %v275
        %v841 = vunpack.c.l.b16 %v276
        %v842 = vunpack.c.h.b16 %v276
        %v843 = vunpack.c.l.b16 %v277
        %v844 = vunpack.c.h.b16 %v277
        %v845 = vunpack.c.l.b16 %v278
        %v846 = vunpack.c.h.b16 %v278
        %v847 = vunpack.c.l.b16 %v279
        %v848 = vunpack.c.h.b16 %v279
        %v849 = vunpack.c.l.b16 %v280
        %v850 = vunpack.c.h.b16 %v280
        %v851 = vunpack.c.l.b16 %v281
        %v852 = vunpack.c.h.b16 %v281
        %v853 = vunpack.c.l.b16 %v282
        %v854 = vunpack.c.h.b16 %v282
        %v855 = vunpack.c.l.b16 %v283
        %v856 = vunpack.c.h.b16 %v283
        %v857 = vunpack.c.l.b16 %v284
        %v858 = vunpack.c.h.b16 %v284
        %v859 = vunpack.c.l.b16 %v285
        %v860 = vunpack.c.h.b16 %v285
        %v861 = vunpack.c.l.b16 %v286
        %v862 = vunpack.c.h.b16 %v286
        %v863 = vunpack.c.l.b16 %v287
        %v864 = vunpack.c.h.b16 %v287
        %v865 = vunpack.c.l.b16 %v288
        %v866 = vunpack.c.h.b16 %v288
        %v867 = vunpack.c.l.b16 %v289
        %v868 = vunpack.c.h.b16 %v289
        %v869 = vunpack.c.l.b16 %v290
        %v870 = vunpack.c.h.b16 %v290
        %v871 = vunpack.c.l.b16 %v291
        %v872 = vunpack.c.h.b16 %v291
        %v873 = vunpack.c.l.b16 %v292
        %v874 = vunpack.c.h.b16 %v292
        %v875 = vunpack.c.l.b16 %v293
        %v876 = vunpack.c.h.b16 %v293
        %v877 = vunpack.c.l.b16 %v294
        %v878 = vunpack.c.h.b16 %v294
        %v879 = vunpack.c.l.b16 %v295
        %v880 = vunpack.c.h.b16 %v295
        %v881 = vunpack.c.l.b16 %v296
        %v882 = vunpack.c.h.b16 %v296
        %v883 = vunpack.c.l.b16 %v297
        %v884 = vunpack.c.h.b16 %v297
        %v885 = vunpack.c.l.b16 %v298
        %v886 = vunpack.c.h.b16 %v298
        %v887 = vunpack.c.l.b16 %v299
        %v888 = vunpack.c.h.b16 %v299
        %v889 = vunpack.c.l.b16 %v300
        %v890 = vunpack.c.h.b16 %v300
        %v891 = vunpack.c.l.b16 %v301
        %v892 = vunpack.c.h.b16 %v301
        %v893 = vunpack.c.l.b16 %v302
        %v894 = vunpack.c.h.b16 %v302
        %v895 = vunpack.c.l.b16 %v303
        %v896 = vunpack.c.h.b16 %v303
        %v897 = vunpack.c.l.b16 %v304
        %v898 = vunpack.c.h.b16 %v304
        %v899 = vunpack.c.l.b16 %v305
        %v900 = vunpack.c.h.b16 %v305
        %v901 = vunpack.c.l.b16 %v306
        %v902 = vunpack.c.h.b16 %v306
        %v903 = vunpack.c.l.b16 %v307
        %v904 = vunpack.c.h.b16 %v307
        %v905 = vunpack.c.l.b16 %v308
        %v906 = vunpack.c.h.b16 %v308
        %v907 = vunpack.c.l.b16 %v309
        %v908 = vunpack.c.h.b16 %v309
        %v909 = vunpack.c.l.b16 %v310
        %v910 = vunpack.c.h.b16 %v310
        %v911 = vunpack.c.l.b16 %v311
        %v912 = vunpack.c.h.b16 %v311
        %v913 = vunpack.c.l.b16 %v312
        %v914 = vunpack.c.h.b16 %v312
        %v915 = vunpack.c.l.b16 %v313
        %v916 = vunpack.c.h.b16 %v313
        %v917 = vunpack.c.l.b16 %v314
        %v918 = vunpack.c.h.b16 %v314
        %v919 = vunpack.c.l.b16 %v315
        %v920 = vunpack.c.h.b16 %v315
        %v921 = vunpack.c.l.b16 %v316
        %v922 = vunpack.c.h.b16 %v316
        %v923 = vunpack.c.l.b16 %v317
        %v924 = vunpack.c.h.b16 %v317
        %v925 = vunpack.c.l.b16 %v318
        %v926 = vunpack.c.h.b16 %v318
        %v927 = vunpack.c.l.b16 %v319
        %v928 = vunpack.c.h.b16 %v319
        %v929 = vunpack.c.l.b16 %v320
        %v930 = vunpack.c.h.b16 %v320
        %v931 = vunpack.c.l.b16 %v321
        %v932 = vunpack.c.h.b16 %v321
        %v933 = vunpack.c.l.b16 %v322
        %v934 = vunpack.c.h.b16 %v322
        %v935 = vunpack.c.l.b16 %v323
        %v936 = vunpack.c.h.b16 %v323
        %v937 = vunpack.c.l.b16 %v324
        %v938 = vunpack.c.h.b16 %v324
        %v939 = vunpack.c.l.b16 %v325
        %v940 = vunpack.c.h.b16 %v325
        %v941 = vunpack.c.l.b16 %v326
        %v942 = vunpack.c.h.b16 %v326
        %v943 = vunpack.c.l.b16 %v327
        %v944 = vunpack.c.h.b16 %v327
        %v945 = vunpack.c.l.b16 %v328
        %v946 = vunpack.c.h.b16 %v328
        %v947 = vunpack.c.l.b16 %v329
        %v948 = vunpack.c.h.b16 %v329
        %v949 = vunpack.c.l.b16 %v330
        %v950 = vunpack.c.h.b16 %v330
        %v951 = vunpack.c.l.b16 %v331
        %v952 = vunpack.c.h.b16 %v331
        %v953 = vunpack.c.l.b16 %v332
        %v954 = vunpack.c.h.b16 %v332
        %v955 = vunpack.c.l.b16 %v333
        %v956 = vunpack.c.h.b16 %v333
        %v957 = vunpack.c.l.b16 %v334
        %v958 = vunpack.c.h.b16 %v334
        %v959 = vunpack.c.l.b16 %v335
        %v960 = vunpack.c.h.b16 %v335
        %v961 = vunpack.c.l.b16 %v336
        %v962 = vunpack.c.h.b16 %v336
        %v963 = vunpack.c.l.b16 %v337
        %v964 = vunpack.c.h.b16 %v337
        %v965 = vunpack.c.l.b16 %v338
        %v966 = vunpack.c.h.b16 %v338
        %v967 = vunpack.c.l.b16 %v339
        %v968 = vunpack.c.h.b16 %v339
        %v969 = vunpack.c.l.b16 %v340
        %v970 = vunpack.c.h.b16 %v340
        %v971 = vunpack.c.l.b16 %v341
        %v972 = vunpack.c.h.b16 %v341
        %v973 = vunpack.c.l.b16 %v342
        %v974 = vunpack.c.h.b16 %v342
        %v975 = vunpack.c.l.b16 %v343
        %v976 = vunpack.c.h.b16 %v343
        %v977 = vunpack.c.l.b16 %v344
        %v978 = vunpack.c.h.b16 %v344
        %v979 = vunpack.c.l.b16 %v345
        %v980 = vunpack.c.h.b16 %v345
        %v981 = vunpack.c.l.b16 %v346
        %v982 = vunpack.c.h.b16 %v346
        %v983 = vunpack.c.l.b16 %v347
        %v984 = vunpack.c.h.b16 %v347
        %v985 = vunpack.c.l.b16 %v348
        %v986 = vunpack.c.h.b16 %v348
        %v987 = vunpack.c.l.b16 %v349
        %v988 = vunpack.c.h.b16 %v349
        %v989 = vunpack.c.l.b16 %v350
        %v990 = vunpack.c.h.b16 %v350
        %v991 = vunpack.c.l.b16 %v351
        %v992 = vunpack.c.h.b16 %v351
        %v993 = vunpack.c.l.b16 %v352
        %v994 = vunpack.c.h.b16 %v352
        %v995 = vunpack.c.l.b16 %v353
        %v996 = vunpack.c.h.b16 %v353
        %v997 = vunpack.c.l.b16 %v354
        %v998 = vunpack.c.h.b16 %v354
        %v999 = vunpack.c.l.b16 %v355
        %v1000 = vunpack.c.h.b16 %v355
        %v1001 = vunpack.c.l.b16 %v356
        %v1002 = vunpack.c.h.b16 %v356
        %v1003 = vunpack.c.l.b16 %v357
        %v1004 = vunpack.c.h.b16 %v357
        %v1005 = vunpack.c.l.b16 %v358
        %v1006 = vunpack.c.h.b16 %v358
        %v1007 = vunpack.c.l.b16 %v359
        %v1008 = vunpack.c.h.b16 %v359
        %v1009 = vunpack.c.l.b16 %v360
        %v1010 = vunpack.c.h.b16 %v360
        %v1011 = vunpack.c.l.b16 %v361
        %v1012 = vunpack.c.h.b16 %v361
        %v1013 = vunpack.c.l.b16 %v362
        %v1014 = vunpack.c.h.b16 %v362
        %v1015 = vunpack.c.l.b16 %v363
        %v1016 = vunpack.c.h.b16 %v363
        %v1017 = vunpack.c.l.b16 %v364
        %v1018 = vunpack.c.h.b16 %v364
        %v1019 = vunpack.c.l.b16 %v365
        %v1020 = vunpack.c.h.b16 %v365
        %v1021 = vunpack.c.l.b16 %v366
        %v1022 = vunpack.c.h.b16 %v366
        %v1023 = vunpack.c.l.b16 %v367
        %v1024 = vunpack.c.h.b16 %v367
        %v1025 = vunpack.c.l.b16 %v368
        %v1026 = vunpack.c.h.b16 %v368
        %v1027 = vunpack.c.l.b16 %v369
        %v1028 = vunpack.c.h.b16 %v369
        %v1029 = vunpack.c.l.b16 %v370
        %v1030 = vunpack.c.h.b16 %v370
        %v1031 = vunpack.c.l.b16 %v371
        %v1032 = vunpack.c.h.b16 %v371
        %v1033 = vunpack.c.l.b16 %v372
        %v1034 = vunpack.c.h.b16 %v372
        %v1035 = vunpack.c.l.b16 %v373
        %v1036 = vunpack.c.h.b16 %v373
        %v1037 = vunpack.c.l.b16 %v374
        %v1038 = vunpack.c.h.b16 %v374
        %v1039 = vunpack.c.l.b16 %v375
        %v1040 = vunpack.c.h.b16 %v375
        %v1041 = vunpack.c.l.b16 %v376
        %v1042 = vunpack.c.h.b16 %v376
        %v1043 = vunpack.c.l.b16 %v377
        %v1044 = vunpack.c.h.b16 %v377
        %v1045 = vunpack.c.l.b16 %v378
        %v1046 = vunpack.c.h.b16 %v378
        %v1047 = vunpack.c.l.b16 %v379
        %v1048 = vunpack.c.h.b16 %v379
        %v1049 = vunpack.c.l.b16 %v380
        %v1050 = vunpack.c.h.b16 %v380
        %v1051 = vunpack.c.l.b16 %v381
        %v1052 = vunpack.c.h.b16 %v381
        %v1053 = vunpack.c.l.b16 %v382
        %v1054 = vunpack.c.h.b16 %v382
        %v1055 = vunpack.c.l.b16 %v383
        %v1056 = vunpack.c.h.b16 %v383
        %v1057 = vunpack.c.l.b16 %v384
        %v1058 = vunpack.c.h.b16 %v384
        %v1059 = vunpack.c.l.b16 %v385
        %v1060 = vunpack.c.h.b16 %v385
        %v1061 = vunpack.c.l.b16 %v386
        %v1062 = vunpack.c.h.b16 %v386
        %v1063 = vunpack.c.l.b16 %v387
        %v1064 = vunpack.c.h.b16 %v387
        %v1065 = vunpack.c.l.b16 %v388
        %v1066 = vunpack.c.h.b16 %v388
        %v1067 = vunpack.c.l.b16 %v389
        %v1068 = vunpack.c.h.b16 %v389
        %v1069 = vunpack.c.l.b16 %v390
        %v1070 = vunpack.c.h.b16 %v390
        %v1071 = vunpack.c.l.b16 %v391
        %v1072 = vunpack.c.h.b16 %v391
        %v1073 = vunpack.c.l.b16 %v392
        %v1074 = vunpack.c.h.b16 %v392
        %v1075 = vunpack.c.l.b16 %v393
        %v1076 = vunpack.c.h.b16 %v393
        %v1077 = vunpack.c.l.b16 %v394
        %v1078 = vunpack.c.h.b16 %v394
        %v1079 = vunpack.c.l.b16 %v395
        %v1080 = vunpack.c.h.b16 %v395
        %v1081 = vunpack.c.l.b16 %v396
        %v1082 = vunpack.c.h.b16 %v396
        %v1083 = vunpack.c.l.b16 %v397
        %v1084 = vunpack.c.h.b16 %v397
        %v1085 = vunpack.c.l.b16 %v398
        %v1086 = vunpack.c.h.b16 %v398
        %v1087 = vunpack.c.l.b16 %v399
        %v1088 = vunpack.c.h.b16 %v399
        %v1089 = vunpack.c.l.b16 %v400
        %v1090 = vunpack.c.h.b16 %v400
        %v1091 = vunpack.c.l.b16 %v401
        %v1092 = vunpack.c.h.b16 %v401
        %v1093 = vunpack.c.l.b16 %v402
        %v1094 = vunpack.c.h.b16 %v402
        %v1095 = vunpack.c.l.b16 %v403
        %v1096 = vunpack.c.h.b16 %v403
        %v1097 = vunpack.c.l.b16 %v404
        %v1098 = vunpack.c.h.b16 %v404
        %v1099 = vunpack.c.l.b16 %v405
        %v1100 = vunpack.c.h.b16 %v405
        %v1101 = vunpack.c.l.b16 %v406
        %v1102 = vunpack.c.h.b16 %v406
        %v1103 = vunpack.c.l.b16 %v407
        %v1104 = vunpack.c.h.b16 %v407
        %v1105 = vunpack.c.l.b16 %v408
        %v1106 = vunpack.c.h.b16 %v408
        %v1107 = vunpack.c.l.b16 %v409
        %v1108 = vunpack.c.h.b16 %v409
        %v1109 = vunpack.c.l.b16 %v410
        %v1110 = vunpack.c.h.b16 %v410
        %v1111 = vunpack.c.l.b16 %v411
        %v1112 = vunpack.c.h.b16 %v411
        %v1113 = vunpack.c.l.b16 %v412
        %v1114 = vunpack.c.h.b16 %v412
        %v1115 = vunpack.c.l.b16 %v413
        %v1116 = vunpack.c.h.b16 %v413
        %v1117 = vunpack.c.l.b16 %v414
        %v1118 = vunpack.c.h.b16 %v414
        %v1119 = vunpack.c.l.b16 %v415
        %v1120 = vunpack.c.h.b16 %v415
        %v1121 = vunpack.c.l.b16 %v416
        %v1122 = vunpack.c.h.b16 %v416
        %v1123 = vunpack.c.l.b16 %v417
        %v1124 = vunpack.c.h.b16 %v417
        %v1125 = vunpack.c.l.b16 %v418
        %v1126 = vunpack.c.h.b16 %v418
        %v1127 = vunpack.c.l.b16 %v419
        %v1128 = vunpack.c.h.b16 %v419
        %v1129 = vunpack.c.l.b16 %v420
        %v1130 = vunpack.c.h.b16 %v420
        %v1131 = vunpack.c.l.b16 %v421
        %v1132 = vunpack.c.h.b16 %v421
        %v1133 = vunpack.c.l.b16 %v422
        %v1134 = vunpack.c.h.b16 %v422
        %v1135 = vunpack.c.l.b16 %v423
        %v1136 = vunpack.c.h.b16 %v423
        %v1137 = vunpack.c.l.b16 %v424
        %v1138 = vunpack.c.h.b16 %v424
        %v1139 = vunpack.c.l.b16 %v425
        %v1140 = vunpack.c.h.b16 %v425
        %v1141 = vunpack.c.l.b16 %v426
        %v1142 = vunpack.c.h.b16 %v426
        %v1143 = vunpack.c.l.b16 %v427
        %v1144 = vunpack.c.h.b16 %v427
        %v1145 = vunpack.c.l.b16 %v428
        %v1146 = vunpack.c.h.b16 %v428
        %v1147 = vunpack.c.l.b16 %v429
        %v1148 = vunpack.c.h.b16 %v429
        %v1149 = vunpack.c.l.b16 %v430
        %v1150 = vunpack.c.h.b16 %v430
        %v1151 = vunpack.c.l.b16 %v431
        %v1152 = vunpack.c.h.b16 %v431
        %v1153 = vunpack.c.l.b16 %v432
        %v1154 = vunpack.c.h.b16 %v432
        %v1155 = vunpack.c.l.b16 %v433
        %v1156 = vunpack.c.h.b16 %v433
        %v1157 = vunpack.c.l.b16 %v434
        %v1158 = vunpack.c.h.b16 %v434
        %v1159 = vunpack.c.l.b16 %v435
        %v1160 = vunpack.c.h.b16 %v435
        %v1161 = vunpack.c.l.b16 %v436
        %v1162 = vunpack.c.h.b16 %v436
        %v1163 = vunpack.c.l.b16 %v437
        %v1164 = vunpack.c.h.b16 %v437
        %v1165 = vunpack.c.l.b16 %v438
        %v1166 = vunpack.c.h.b16 %v438
        %v1167 = vunpack.c.l.b16 %v439
        %v1168 = vunpack.c.h.b16 %v439
        %v1169 = vunpack.c.l.b16 %v440
        %v1170 = vunpack.c.h.b16 %v440
        %v1171 = vunpack.c.l.b16 %v441
        %v1172 = vunpack.c.h.b16 %v441
        %v1173 = vunpack.c.l.b16 %v442
        %v1174 = vunpack.c.h.b16 %v442
        %v1175 = vunpack.c.l.b16 %v443
        %v1176 = vunpack.c.h.b16 %v443
        %v1177 = vunpack.c.l.b16 %v444
        %v1178 = vunpack.c.h.b16 %v444
        %v1179 = vunpack.c.l.b16 %v445
        %v1180 = vunpack.c.h.b16 %v445
        %v1181 = vunpack.c.l.b16 %v446
        %v1182 = vunpack.c.h.b16 %v446
        %v1183 = vunpack.c.l.b16 %v447
        %v1184 = vunpack.c.h.b16 %v447
        %v1185 = vunpack.c.l.b16 %v448
        %v1186 = vunpack.c.h.b16 %v448
        %v1187 = vunpack.c.l.b16 %v449
        %v1188 = vunpack.c.h.b16 %v449
        %v1189 = vunpack.c.l.b16 %v450
        %v1190 = vunpack.c.h.b16 %v450
        %v1191 = vunpack.c.l.b16 %v451
        %v1192 = vunpack.c.h.b16 %v451
        %v1193 = vunpack.c.l.b16 %v452
        %v1194 = vunpack.c.h.b16 %v452
        %v1195 = vunpack.c.l.b16 %v453
        %v1196 = vunpack.c.h.b16 %v453
        %v1197 = vunpack.c.l.b16 %v454
        %v1198 = vunpack.c.h.b16 %v454
        %v1199 = vunpack.c.l.b16 %v455
        %v1200 = vunpack.c.h.b16 %v455
        %v1201 = vunpack.c.l.b16 %v456
        %v1202 = vunpack.c.h.b16 %v456
        %v1203 = vunpack.c.l.b16 %v457
        %v1204 = vunpack.c.h.b16 %v457
        %v1205 = vunpack.c.l.b16 %v458
        %v1206 = vunpack.c.h.b16 %v458
        %v1207 = vunpack.c.l.b16 %v459
        %v1208 = vunpack.c.h.b16 %v459
        %v1209 = vunpack.c.l.b16 %v460
        %v1210 = vunpack.c.h.b16 %v460
        %v1211 = vunpack.c.l.b16 %v461
        %v1212 = vunpack.c.h.b16 %v461
        %v1213 = vunpack.c.l.b16 %v462
        %v1214 = vunpack.c.h.b16 %v462
        %v1215 = vunpack.c.l.b16 %v463
        %v1216 = vunpack.c.h.b16 %v463
        %v1217 = vunpack.c.l.b16 %v464
        %v1218 = vunpack.c.h.b16 %v464
        %v1219 = vunpack.c.l.b16 %v465
        %v1220 = vunpack.c.h.b16 %v465
        %v1221 = vunpack.c.l.b16 %v466
        %v1222 = vunpack.c.h.b16 %v466
        %v1223 = vunpack.c.l.b16 %v467
        %v1224 = vunpack.c.h.b16 %v467
        %v1225 = vunpack.c.l.b16 %v468
        %v1226 = vunpack.c.h.b16 %v468
        %v1227 = vunpack.c.l.b16 %v469
        %v1228 = vunpack.c.h.b16 %v469
        %v1229 = vunpack.c.l.b16 %v470
        %v1230 = vunpack.c.h.b16 %v470
        %v1231 = vunpack.c.l.b16 %v471
        %v1232 = vunpack.c.h.b16 %v471
        %v1233 = vunpack.c.l.b16 %v472
        %v1234 = vunpack.c.h.b16 %v472
        %v1235 = vunpack.c.l.b16 %v473
        %v1236 = vunpack.c.h.b16 %v473
        %v1237 = vunpack.c.l.b16 %v474
        %v1238 = vunpack.c.h.b16 %v474
        %v1239 = vunpack.c.l.b16 %v475
        %v1240 = vunpack.c.h.b16 %v475
        %v1241 = vunpack.c.l.b16 %v476
        %v1242 = vunpack.c.h.b16 %v476
        %v1243 = vunpack.c.l.b16 %v477
        %v1244 = vunpack.c.h.b16 %v477
        %v1245 = vunpack.c.l.b16 %v478
        %v1246 = vunpack.c.h.b16 %v478
        %v1247 = vunpack.c.l.b16 %v479
        %v1248 = vunpack.c.h.b16 %v479
        %v1249 = vunpack.c.l.b16 %v480
        %v1250 = vunpack.c.h.b16 %v480
        %v1251 = vunpack.c.l.b16 %v481
        %v1252 = vunpack.c.h.b16 %v481
        %v1253 = vunpack.c.l.b16 %v482
        %v1254 = vunpack.c.h.b16 %v482
        %v1255 = vunpack.c.l.b16 %v483
        %v1256 = vunpack.c.h.b16 %v483
        %v1257 = vunpack.c.l.b16 %v484
        %v1258 = vunpack.c.h.b16 %v484
        %v1259 = vunpack.c.l.b16 %v485
        %v1260 = vunpack.c.h.b16 %v485
        %v1261 = vunpack.c.l.b16 %v486
        %v1262 = vunpack.c.h.b16 %v486
        %v1263 = vunpack.c.l.b16 %v487
        %v1264 = vunpack.c.h.b16 %v487
        %v1265 = vunpack.c.l.b16 %v488
        %v1266 = vunpack.c.h.b16 %v488
        %v1267 = vunpack.c.l.b16 %v489
        %v1268 = vunpack.c.h.b16 %v489
        %v1269 = vunpack.c.l.b16 %v490
        %v1270 = vunpack.c.h.b16 %v490
        %v1271 = vunpack.c.l.b16 %v491
        %v1272 = vunpack.c.h.b16 %v491
        %v1273 = vunpack.c.l.b16 %v492
        %v1274 = vunpack.c.h.b16 %v492
        %v1275 = vunpack.c.l.b16 %v493
        %v1276 = vunpack.c.h.b16 %v493
        %v1277 = vunpack.c.l.b16 %v494
        %v1278 = vunpack.c.h.b16 %v494
        %v1279 = vunpack.c.l.b16 %v495
        %v1280 = vunpack.c.h.b16 %v495
        %v1281 = vunpack.c.l.b16 %v496
        %v1282 = vunpack.c.h.b16 %v496
        %v1283 = vpack.c.b16 %v775, %v771
        %v1284 = vpack.c.b16 %v776, %v772
        %v1285 = vpack.c.b16 %v777, %v773
        %v1286 = vpack.c.b16 %v778, %v774
        %v1287 = vpack.c.b16 %v783, %v779
        %v1288 = vpack.c.b16 %v784, %v780
        %v1289 = vpack.c.b16 %v785, %v781
        %v1290 = vpack.c.b16 %v786, %v782
        %v1291 = vpack.c.b16 %v791, %v787
        %v1292 = vpack.c.b16 %v792, %v788
        %v1293 = vpack.c.b16 %v793, %v789
        %v1294 = vpack.c.b16 %v794, %v790
        %v1295 = vpack.c.b16 %v799, %v795
        %v1296 = vpack.c.b16 %v800, %v796
        %v1297 = vpack.c.b16 %v801, %v797
        %v1298 = vpack.c.b16 %v802, %v798
        %v1299 = vpack.c.b16 %v807, %v803
        %v1300 = vpack.c.b16 %v808, %v804
        %v1301 = vpack.c.b16 %v809, %v805
        %v1302 = vpack.c.b16 %v810, %v806
        %v1303 = vpack.c.b16 %v815, %v811
        %v1304 = vpack.c.b16 %v816, %v812
        %v1305 = vpack.c.b16 %v817, %v813
        %v1306 = vpack.c.b16 %v818, %v814
        %v1307 = vpack.c.b16 %v823, %v819
        %v1308 = vpack.c.b16 %v824, %v820
        %v1309 = vpack.c.b16 %v825, %v821
        %v1310 = vpack.c.b16 %v826, %v822
        %v1311 = vpack.c.b16 %v831, %v827
        %v1312 = vpack.c.b16 %v832, %v828
        %v1313 = vpack.c.b16 %v833, %v829
        %v1314 = vpack.c.b16 %v834, %v830
        %v1315 = vpack.c.b16 %v839, %v835
        %v1316 = vpack.c.b16 %v840, %v836
        %v1317 = vpack.c.b16 %v841, %v837
        %v1318 = vpack.c.b16 %v842, %v838
        %v1319 = vpack.c.b16 %v847, %v843
        %v1320 = vpack.c.b16 %v848, %v844
        %v1321 = vpack.c.b16 %v849, %v845
        %v1322 = vpack.c.b16 %v850, %v846
        %v1323 = vpack.c.b16 %v855, %v851
        %v1324 = vpack.c.b16 %v856, %v852
        %v1325 = vpack.c.b16 %v857, %v853
        %v1326 = vpack.c.b16 %v858, %v854
        %v1327 = vpack.c.b16 %v863, %v859
        %v1328 = vpack.c.b16 %v864, %v860
        %v1329 = vpack.c.b16 %v865, %v861
        %v1330 = vpack.c.b16 %v866, %v862
        %v1331 = vpack.c.b16 %v871, %v867
        %v1332 = vpack.c.b16 %v872, %v868
        %v1333 = vpack.c.b16 %v873, %v869
        %v1334 = vpack.c.b16 %v874, %v870
        %v1335 = vpack.c.b16 %v879, %v875
        %v1336 = vpack.c.b16 %v880, %v876
        %v1337 = vpack.c.b16 %v881, %v877
        %v1338 = vpack.c.b16 %v882, %v878
        %v1339 = vpack.c.b16 %v887, %v883
        %v1340 = vpack.c.b16 %v888, %v884
        %v1341 = vpack.c.b16 %v889, %v885
        %v1342 = vpack.c.b16 %v890, %v886
        %v1343 = vpack.c.b16 %v895, %v891
        %v1344 = vpack.c.b16 %v896, %v892
        %v1345 = vpack.c.b16 %v897, %v893
        %v1346 = vpack.c.b16 %v898, %v894
        %v1347 = vpack.c.b16 %v903, %v899
        %v1348 = vpack.c.b16 %v904, %v900
        %v1349 = vpack.c.b16 %v905, %v901
        %v1350 = vpack.c.b16 %v906, %v902
        %v1351 = vpack.c.b16 %v911, %v907
        %v1352 = vpack.c.b16 %v912, %v908
        %v1353 = vpack.c.b16 %v913, %v909
        %v1354 = vpack.c.b16 %v914, %v910
        %v1355 = vpack.c.b16 %v919, %v915
        %v1356 = vpack.c.b16 %v920, %v916
        %v1357 = vpack.c.b16 %v921, %v917
        %v1358 = vpack.c.b16 %v922, %v918
        %v1359 = vpack.c.b16 %v927, %v923
        %v1360 = vpack.c.b16 %v928, %v924
        %v1361 = vpack.c.b16 %v929, %v925
        %v1362 = vpack.c.b16 %v930, %v926
        %v1363 = vpack.c.b16 %v935, %v931
        %v1364 = vpack.c.b16 %v936, %v932
        %v1365 = vpack.c.b16 %v937, %v933
        %v1366 = vpack.c.b16 %v938, %v934
        %v1367 = vpack.c.b16 %v943, %v939
        %v1368 = vpack.c.b16 %v944, %v940
        %v1369 = vpack.c.b16 %v945, %v941
        %v1370 = vpack.c.b16 %v946, %v942
        %v1371 = vpack.c.b16 %v951, %v947
        %v1372 = vpack.c.b16 %v952, %v948
        %v1373 = vpack.c.b16 %v953, %v949
        %v1374 = vpack.c.b16 %v954, %v950
        %v1375 = vpack.c.b16 %v959, %v955
        %v1376 = vpack.c.b16 %v960, %v956
        %v1377 = vpack.c.b16 %v961, %v957
        %v1378 = vpack.c.b16 %v962, %v958
        %v1379 = vpack.c.b16 %v967, %v963
        %v1380 = vpack.c.b16 %v968, %v964
        %v1381 = vpack.c.b16 %v969, %v965
        %v1382 = vpack.c.b16 %v970, %v966
        %v1383 = vpack.c.b16 %v975, %v971
        %v1384 = vpack.c.b16 %v976, %v972
        %v1385 = vpack.c.b16 %v977, %v973
        %v1386 = vpack.c.b16 %v978, %v974
        %v1387 = vpack.c.b16 %v983, %v979
        %v1388 = vpack.c.b16 %v984, %v980
        %v1389 = vpack.c.b16 %v985, %v981
        %v1390 = vpack.c.b16 %v986, %v982
        %v1391 = vpack.c.b16 %v991, %v987
        %v1392 = vpack.c.b16 %v992, %v988
        %v1393 = vpack.c.b16 %v993, %v989
        %v1394 = vpack.c.b16 %v994, %v990
        %v1395 = vpack.c.b16 %v999, %v995
        %v1396 = vpack.c.b16 %v1000, %v996
        %v1397 = vpack.c.b16 %v1001, %v997
        %v1398 = vpack.c.b16 %v1002, %v998
        %v1399 = vpack.c.b16 %v1007, %v1003
        %v1400 = vpack.c.b16 %v1008, %v1004
        %v1401 = vpack.c.b16 %v1009, %v1005
        %v1402 = vpack.c.b16 %v1010, %v1006
        %v1403 = vpack.c.b16 %v1015, %v1011
        %v1404 = vpack.c.b16 %v1016, %v1012
        %v1405 = vpack.c.b16 %v1017, %v1013
        %v1406 = vpack.c.b16 %v1018, %v1014
        %v1407 = vpack.c.b16 %v1023, %v1019
        %v1408 = vpack.c.b16 %v1024, %v1020
        %v1409 = vpack.c.b16 %v1025, %v1021
        %v1410 = vpack.c.b16 %v1026, %v1022
        %v1411 = vpack.c.b16 %v1031, %v1027
        %v1412 = vpack.c.b16 %v1032, %v1028
        %v1413 = vpack.c.b16 %v1033, %v1029
        %v1414 = vpack.c.b16 %v1034, %v1030
        %v1415 = vpack.c.b16 %v1039, %v1035
        %v1416 = vpack.c.b16 %v1040, %v1036
        %v1417 = vpack.c.b16 %v1041, %v1037
        %v1418 = vpack.c.b16 %v1042, %v1038
        %v1419 = vpack.c.b16 %v1047, %v1043
        %v1420 = vpack.c.b16 %v1048, %v1044
        %v1421 = vpack.c.b16 %v1049, %v1045
        %v1422 = vpack.c.b16 %v1050, %v1046
        %v1423 = vpack.c.b16 %v1055, %v1051
        %v1424 = vpack.c.b16 %v1056, %v1052
        %v1425 = vpack.c.b16 %v1057, %v1053
        %v1426 = vpack.c.b16 %v1058, %v1054
        %v1427 = vpack.c.b16 %v1063, %v1059
        %v1428 = vpack.c.b16 %v1064, %v1060
        %v1429 = vpack.c.b16 %v1065, %v1061
        %v1430 = vpack.c.b16 %v1066, %v1062
        %v1431 = vpack.c.b16 %v1071, %v1067
        %v1432 = vpack.c.b16 %v1072, %v1068
        %v1433 = vpack.c.b16 %v1073, %v1069
        %v1434 = vpack.c.b16 %v1074, %v1070
        %v1435 = vpack.c.b16 %v1079, %v1075
        %v1436 = vpack.c.b16 %v1080, %v1076
        %v1437 = vpack.c.b16 %v1081, %v1077
        %v1438 = vpack.c.b16 %v1082, %v1078
        %v1439 = vpack.c.b16 %v1087, %v1083
        %v1440 = vpack.c.b16 %v1088, %v1084
        %v1441 = vpack.c.b16 %v1089, %v1085
        %v1442 = vpack.c.b16 %v1090, %v1086
        %v1443 = vpack.c.b16 %v1095, %v1091
        %v1444 = vpack.c.b16 %v1096, %v1092
        %v1445 = vpack.c.b16 %v1097, %v1093
        %v1446 = vpack.c.b16 %v1098, %v1094
        %v1447 = vpack.c.b16 %v1103, %v1099
        %v1448 = vpack.c.b16 %v1104, %v1100
        %v1449 = vpack.c.b16 %v1105, %v1101
        %v1450 = vpack.c.b16 %v1106, %v1102
        %v1451 = vpack.c.b16 %v1111, %v1107
        %v1452 = vpack.c.b16 %v1112, %v1108
        %v1453 = vpack.c.b16 %v1113, %v1109
        %v1454 = vpack.c.b16 %v1114, %v1110
        %v1455 = vpack.c.b16 %v1119, %v1115
        %v1456 = vpack.c.b16 %v1120, %v1116
        %v1457 = vpack.c.b16 %v1121, %v1117
        %v1458 = vpack.c.b16 %v1122, %v1118
        %v1459 = vpack.c.b16 %v1127, %v1123
        %v1460 = vpack.c.b16 %v1128, %v1124
        %v1461 = vpack.c.b16 %v1129, %v1125
        %v1462 = vpack.c.b16 %v1130, %v1126
        %v1463 = vpack.c.b16 %v1135, %v1131
        %v1464 = vpack.c.b16 %v1136, %v1132
        %v1465 = vpack.c.b16 %v1137, %v1133
        %v1466 = vpack.c.b16 %v1138, %v1134
        %v1467 = vpack.c.b16 %v1143, %v1139
        %v1468 = vpack.c.b16 %v1144, %v1140
        %v1469 = vpack.c.b16 %v1145, %v1141
        %v1470 = vpack.c.b16 %v1146, %v1142
        %v1471 = vpack.c.b16 %v1151, %v1147
        %v1472 = vpack.c.b16 %v1152, %v1148
        %v1473 = vpack.c.b16 %v1153, %v1149
        %v1474 = vpack.c.b16 %v1154, %v1150
        %v1475 = vpack.c.b16 %v1159, %v1155
        %v1476 = vpack.c.b16 %v1160, %v1156
        %v1477 = vpack.c.b16 %v1161, %v1157
        %v1478 = vpack.c.b16 %v1162, %v1158
        %v1479 = vpack.c.b16 %v1167, %v1163
        %v1480 = vpack.c.b16 %v1168, %v1164
        %v1481 = vpack.c.b16 %v1169, %v1165
        %v1482 = vpack.c.b16 %v1170, %v1166
        %v1483 = vpack.c.b16 %v1175, %v1171
        %v1484 = vpack.c.b16 %v1176, %v1172
        %v1485 = vpack.c.b16 %v1177, %v1173
        %v1486 = vpack.c.b16 %v1178, %v1174
        %v1487 = vpack.c.b16 %v1183, %v1179
        %v1488 = vpack.c.b16 %v1184, %v1180
        %v1489 = vpack.c.b16 %v1185, %v1181
        %v1490 = vpack.c.b16 %v1186, %v1182
        %v1491 = vpack.c.b16 %v1191, %v1187
        %v1492 = vpack.c.b16 %v1192, %v1188
        %v1493 = vpack.c.b16 %v1193, %v1189
        %v1494 = vpack.c.b16 %v1194, %v1190
        %v1495 = vpack.c.b16 %v1199, %v1195
        %v1496 = vpack.c.b16 %v1200, %v1196
        %v1497 = vpack.c.b16 %v1201, %v1197
        %v1498 = vpack.c.b16 %v1202, %v1198
        %v1499 = vpack.c.b16 %v1207, %v1203
        %v1500 = vpack.c.b16 %v1208, %v1204
        %v1501 = vpack.c.b16 %v1209, %v1205
        %v1502 = vpack.c.b16 %v1210, %v1206
        %v1503 = vpack.c.b16 %v1215, %v1211
        %v1504 = vpack.c.b16 %v1216, %v1212
        %v1505 = vpack.c.b16 %v1217, %v1213
        %v1506 = vpack.c.b16 %v1218, %v1214
        %v1507 = vpack.c.b16 %v1223, %v1219
        %v1508 = vpack.c.b16 %v1224, %v1220
        %v1509 = vpack.c.b16 %v1225, %v1221
        %v1510 = vpack.c.b16 %v1226, %v1222
        %v1511 = vpack.c.b16 %v1231, %v1227
        %v1512 = vpack.c.b16 %v1232, %v1228
        %v1513 = vpack.c.b16 %v1233, %v1229
        %v1514 = vpack.c.b16 %v1234, %v1230
        %v1515 = vpack.c.b16 %v1239, %v1235
        %v1516 = vpack.c.b16 %v1240, %v1236
        %v1517 = vpack.c.b16 %v1241, %v1237
        %v1518 = vpack.c.b16 %v1242, %v1238
        %v1519 = vpack.c.b16 %v1247, %v1243
        %v1520 = vpack.c.b16 %v1248, %v1244
        %v1521 = vpack.c.b16 %v1249, %v1245
        %v1522 = vpack.c.b16 %v1250, %v1246
        %v1523 = vpack.c.b16 %v1255, %v1251
        %v1524 = vpack.c.b16 %v1256, %v1252
        %v1525 = vpack.c.b16 %v1257, %v1253
        %v1526 = vpack.c.b16 %v1258, %v1254
        %v1527 = vpack.c.b16 %v1263, %v1259
        %v1528 = vpack.c.b16 %v1264, %v1260
        %v1529 = vpack.c.b16 %v1265, %v1261
        %v1530 = vpack.c.b16 %v1266, %v1262
        %v1531 = vpack.c.b16 %v1271, %v1267
        %v1532 = vpack.c.b16 %v1272, %v1268
        %v1533 = vpack.c.b16 %v1273, %v1269
        %v1534 = vpack.c.b16 %v1274, %v1270
        %v1535 = vpack.c.b16 %v1279, %v1275
        %v1536 = vpack.c.b16 %v1280, %v1276
        %v1537 = vpack.c.b16 %v1281, %v1277
        %v1538 = vpack.c.b16 %v1282, %v1278
        %1795 = vmatpush.bf16.msra.mxu0 %v1311
        %1796 = vmatpush.bf16.msra.mxu0 %v1307
        %1797 = vmatpush.bf16.msra.mxu0 %v1303
        %1798 = vmatpush.bf16.msra.mxu0 %v1299
        %1799 = vmatpush.bf16.msra.mxu0 %v1295
        %1800 = vmatpush.bf16.msra.mxu0 %v1291
        %1801 = vmatpush.bf16.msra.mxu0 %v1287
        %1802 = vmatpush.bf16.msra.mxu0 %v1283
        %1803 = vmatmul.bf16.gmra.mxu0 %v499
        %v1804 = vpop.f32.mrf.mxu0
        %v1805 = vadd.f32 0.0, %v1804
        %v1806 = vpop.f32.mrf.mxu0
        %1807 = vdwg.mxu0
        %1808 = vmatpush.bf16.msra.mxu0 %v1343
        %1809 = vmatpush.bf16.msra.mxu0 %v1339
        %1810 = vmatpush.bf16.msra.mxu0 %v1335
        %1811 = vmatpush.bf16.msra.mxu0 %v1331
        %1812 = vmatpush.bf16.msra.mxu0 %v1327
        %1813 = vmatpush.bf16.msra.mxu0 %v1323
        %1814 = vmatpush.bf16.msra.mxu0 %v1319
        %1815 = vmatpush.bf16.msra.mxu0 %v1315
        %1816 = vmatmul.bf16.gmra.mxu0 %v500
        %v1817 = vpop.f32.mrf.mxu0
        %v1818 = vadd.f32 %v1805, %v1817
        %v1819 = vpop.f32.mrf.mxu0
        %1820 = vdwg.mxu0
        %1821 = vmatpush.bf16.msra.mxu0 %v1375
        %1822 = vmatpush.bf16.msra.mxu0 %v1371
        %1823 = vmatpush.bf16.msra.mxu0 %v1367
        %1824 = vmatpush.bf16.msra.mxu0 %v1363
        %1825 = vmatpush.bf16.msra.mxu0 %v1359
        %1826 = vmatpush.bf16.msra.mxu0 %v1355
        %1827 = vmatpush.bf16.msra.mxu0 %v1351
        %1828 = vmatpush.bf16.msra.mxu0 %v1347
        %1829 = vmatmul.bf16.gmra.mxu0 %v501
        %v1830 = vpop.f32.mrf.mxu0
        %v1831 = vadd.f32 %v1818, %v1830
        %v1832 = vpop.f32.mrf.mxu0
        %1833 = vdwg.mxu0
        %1834 = vmatpush.bf16.msra.mxu0 %v1407
        %1835 = vmatpush.bf16.msra.mxu0 %v1403
        %1836 = vmatpush.bf16.msra.mxu0 %v1399
        %1837 = vmatpush.bf16.msra.mxu0 %v1395
        %1838 = vmatpush.bf16.msra.mxu0 %v1391
        %1839 = vmatpush.bf16.msra.mxu0 %v1387
        %1840 = vmatpush.bf16.msra.mxu0 %v1383
        %1841 = vmatpush.bf16.msra.mxu0 %v1379
        %1842 = vmatmul.bf16.gmra.mxu0 %v502
        %v1843 = vpop.f32.mrf.mxu0
        %v1844 = vadd.f32 %v1831, %v1843
        %v1845 = vpop.f32.mrf.mxu0
        %1846 = vdwg.mxu0
        %1847 = vmatpush.bf16.msra.mxu0 %v1439
        %1848 = vmatpush.bf16.msra.mxu0 %v1435
        %1849 = vmatpush.bf16.msra.mxu0 %v1431
        %1850 = vmatpush.bf16.msra.mxu0 %v1427
        %1851 = vmatpush.bf16.msra.mxu0 %v1423
        %1852 = vmatpush.bf16.msra.mxu0 %v1419
        %1853 = vmatpush.bf16.msra.mxu0 %v1415
        %1854 = vmatpush.bf16.msra.mxu0 %v1411
        %1855 = vmatmul.bf16.gmra.mxu0 %v503
        %v1856 = vpop.f32.mrf.mxu0
        %v1857 = vadd.f32 %v1844, %v1856
        %v1858 = vpop.f32.mrf.mxu0
        %1859 = vdwg.mxu0
        %1860 = vmatpush.bf16.msra.mxu0 %v1471
        %1861 = vmatpush.bf16.msra.mxu0 %v1467
        %1862 = vmatpush.bf16.msra.mxu0 %v1463
        %1863 = vmatpush.bf16.msra.mxu0 %v1459
        %1864 = vmatpush.bf16.msra.mxu0 %v1455
        %1865 = vmatpush.bf16.msra.mxu0 %v1451
        %1866 = vmatpush.bf16.msra.mxu0 %v1447
        %1867 = vmatpush.bf16.msra.mxu0 %v1443
        %1868 = vmatmul.bf16.gmra.mxu0 %v504
        %v1869 = vpop.f32.mrf.mxu0
        %v1870 = vadd.f32 %v1857, %v1869
        %v1871 = vpop.f32.mrf.mxu0
        %1872 = vdwg.mxu0
        %1873 = vmatpush.bf16.msra.mxu0 %v1503
        %1874 = vmatpush.bf16.msra.mxu0 %v1499
        %1875 = vmatpush.bf16.msra.mxu0 %v1495
        %1876 = vmatpush.bf16.msra.mxu0 %v1491
        %1877 = vmatpush.bf16.msra.mxu0 %v1487
        %1878 = vmatpush.bf16.msra.mxu0 %v1483
        %1879 = vmatpush.bf16.msra.mxu0 %v1479
        %1880 = vmatpush.bf16.msra.mxu0 %v1475
        %1881 = vmatmul.bf16.gmra.mxu0 %v505
        %v1882 = vpop.f32.mrf.mxu0
        %v1883 = vadd.f32 %v1870, %v1882
        %v1884 = vpop.f32.mrf.mxu0
        %1885 = vdwg.mxu0
        %1886 = vmatpush.bf16.msra.mxu0 %v1535
        %1887 = vmatpush.bf16.msra.mxu0 %v1531
        %1888 = vmatpush.bf16.msra.mxu0 %v1527
        %1889 = vmatpush.bf16.msra.mxu0 %v1523
        %1890 = vmatpush.bf16.msra.mxu0 %v1519
        %1891 = vmatpush.bf16.msra.mxu0 %v1515
        %1892 = vmatpush.bf16.msra.mxu0 %v1511
        %1893 = vmatpush.bf16.msra.mxu0 %v1507
        %1894 = vmatmul.bf16.gmra.mxu0 %v506
        %v1895 = vpop.f32.mrf.mxu0
        %v1896 = vadd.f32 %v1883, %v1895
        %v1897 = vpop.f32.mrf.mxu0
        %1898 = vdwg.mxu0
        %1899 = vmatpush.bf16.msra.mxu0 %v1312
        %1900 = vmatpush.bf16.msra.mxu0 %v1308
        %1901 = vmatpush.bf16.msra.mxu0 %v1304
        %1902 = vmatpush.bf16.msra.mxu0 %v1300
        %1903 = vmatpush.bf16.msra.mxu0 %v1296
        %1904 = vmatpush.bf16.msra.mxu0 %v1292
        %1905 = vmatpush.bf16.msra.mxu0 %v1288
        %1906 = vmatpush.bf16.msra.mxu0 %v1284
        %1907 = vmatmul.bf16.gmra.mxu0 %v499
        %v1908 = vpop.f32.mrf.mxu0
        %v1909 = vadd.f32 0.0, %v1908
        %v1910 = vpop.f32.mrf.mxu0
        %1911 = vdwg.mxu0
        %1912 = vmatpush.bf16.msra.mxu0 %v1344
        %1913 = vmatpush.bf16.msra.mxu0 %v1340
        %1914 = vmatpush.bf16.msra.mxu0 %v1336
        %1915 = vmatpush.bf16.msra.mxu0 %v1332
        %1916 = vmatpush.bf16.msra.mxu0 %v1328
        %1917 = vmatpush.bf16.msra.mxu0 %v1324
        %1918 = vmatpush.bf16.msra.mxu0 %v1320
        %1919 = vmatpush.bf16.msra.mxu0 %v1316
        %1920 = vmatmul.bf16.gmra.mxu0 %v500
        %v1921 = vpop.f32.mrf.mxu0
        %v1922 = vadd.f32 %v1909, %v1921
        %v1923 = vpop.f32.mrf.mxu0
        %1924 = vdwg.mxu0
        %1925 = vmatpush.bf16.msra.mxu0 %v1376
        %1926 = vmatpush.bf16.msra.mxu0 %v1372
        %1927 = vmatpush.bf16.msra.mxu0 %v1368
        %1928 = vmatpush.bf16.msra.mxu0 %v1364
        %1929 = vmatpush.bf16.msra.mxu0 %v1360
        %1930 = vmatpush.bf16.msra.mxu0 %v1356
        %1931 = vmatpush.bf16.msra.mxu0 %v1352
        %1932 = vmatpush.bf16.msra.mxu0 %v1348
        %1933 = vmatmul.bf16.gmra.mxu0 %v501
        %v1934 = vpop.f32.mrf.mxu0
        %v1935 = vadd.f32 %v1922, %v1934
        %v1936 = vpop.f32.mrf.mxu0
        %1937 = vdwg.mxu0
        %1938 = vmatpush.bf16.msra.mxu0 %v1408
        %1939 = vmatpush.bf16.msra.mxu0 %v1404
        %1940 = vmatpush.bf16.msra.mxu0 %v1400
        %1941 = vmatpush.bf16.msra.mxu0 %v1396
        %1942 = vmatpush.bf16.msra.mxu0 %v1392
        %1943 = vmatpush.bf16.msra.mxu0 %v1388
        %1944 = vmatpush.bf16.msra.mxu0 %v1384
        %1945 = vmatpush.bf16.msra.mxu0 %v1380
        %1946 = vmatmul.bf16.gmra.mxu0 %v502
        %v1947 = vpop.f32.mrf.mxu0
        %v1948 = vadd.f32 %v1935, %v1947
        %v1949 = vpop.f32.mrf.mxu0
        %1950 = vdwg.mxu0
        %1951 = vmatpush.bf16.msra.mxu0 %v1440
        %1952 = vmatpush.bf16.msra.mxu0 %v1436
        %1953 = vmatpush.bf16.msra.mxu0 %v1432
        %1954 = vmatpush.bf16.msra.mxu0 %v1428
        %1955 = vmatpush.bf16.msra.mxu0 %v1424
        %1956 = vmatpush.bf16.msra.mxu0 %v1420
        %1957 = vmatpush.bf16.msra.mxu0 %v1416
        %1958 = vmatpush.bf16.msra.mxu0 %v1412
        %1959 = vmatmul.bf16.gmra.mxu0 %v503
        %v1960 = vpop.f32.mrf.mxu0
        %v1961 = vadd.f32 %v1948, %v1960
        %v1962 = vpop.f32.mrf.mxu0
        %1963 = vdwg.mxu0
        %1964 = vmatpush.bf16.msra.mxu0 %v1472
        %1965 = vmatpush.bf16.msra.mxu0 %v1468
        %1966 = vmatpush.bf16.msra.mxu0 %v1464
        %1967 = vmatpush.bf16.msra.mxu0 %v1460
        %1968 = vmatpush.bf16.msra.mxu0 %v1456
        %1969 = vmatpush.bf16.msra.mxu0 %v1452
        %1970 = vmatpush.bf16.msra.mxu0 %v1448
        %1971 = vmatpush.bf16.msra.mxu0 %v1444
        %1972 = vmatmul.bf16.gmra.mxu0 %v504
        %v1973 = vpop.f32.mrf.mxu0
        %v1974 = vadd.f32 %v1961, %v1973
        %v1975 = vpop.f32.mrf.mxu0
        %1976 = vdwg.mxu0
        %1977 = vmatpush.bf16.msra.mxu0 %v1504
        %1978 = vmatpush.bf16.msra.mxu0 %v1500
        %1979 = vmatpush.bf16.msra.mxu0 %v1496
        %1980 = vmatpush.bf16.msra.mxu0 %v1492
        %1981 = vmatpush.bf16.msra.mxu0 %v1488
        %1982 = vmatpush.bf16.msra.mxu0 %v1484
        %1983 = vmatpush.bf16.msra.mxu0 %v1480
        %1984 = vmatpush.bf16.msra.mxu0 %v1476
        %1985 = vmatmul.bf16.gmra.mxu0 %v505
        %v1986 = vpop.f32.mrf.mxu0
        %v1987 = vadd.f32 %v1974, %v1986
        %v1988 = vpop.f32.mrf.mxu0
        %1989 = vdwg.mxu0
        %1990 = vmatpush.bf16.msra.mxu0 %v1536
        %1991 = vmatpush.bf16.msra.mxu0 %v1532
        %1992 = vmatpush.bf16.msra.mxu0 %v1528
        %1993 = vmatpush.bf16.msra.mxu0 %v1524
        %1994 = vmatpush.bf16.msra.mxu0 %v1520
        %1995 = vmatpush.bf16.msra.mxu0 %v1516
        %1996 = vmatpush.bf16.msra.mxu0 %v1512
        %1997 = vmatpush.bf16.msra.mxu0 %v1508
        %1998 = vmatmul.bf16.gmra.mxu0 %v506
        %v1999 = vpop.f32.mrf.mxu0
        %v2000 = vadd.f32 %v1987, %v1999
        %v2001 = vpop.f32.mrf.mxu0
        %2002 = vdwg.mxu0
        %2003 = vmatpush.bf16.msra.mxu0 %v1313
        %2004 = vmatpush.bf16.msra.mxu0 %v1309
        %2005 = vmatpush.bf16.msra.mxu0 %v1305
        %2006 = vmatpush.bf16.msra.mxu0 %v1301
        %2007 = vmatpush.bf16.msra.mxu0 %v1297
        %2008 = vmatpush.bf16.msra.mxu0 %v1293
        %2009 = vmatpush.bf16.msra.mxu0 %v1289
        %2010 = vmatpush.bf16.msra.mxu0 %v1285
        %2011 = vmatmul.bf16.gmra.mxu0 %v499
        %v2012 = vpop.f32.mrf.mxu0
        %v2013 = vadd.f32 0.0, %v2012
        %v2014 = vpop.f32.mrf.mxu0
        %2015 = vdwg.mxu0
        %2016 = vmatpush.bf16.msra.mxu0 %v1345
        %2017 = vmatpush.bf16.msra.mxu0 %v1341
        %2018 = vmatpush.bf16.msra.mxu0 %v1337
        %2019 = vmatpush.bf16.msra.mxu0 %v1333
        %2020 = vmatpush.bf16.msra.mxu0 %v1329
        %2021 = vmatpush.bf16.msra.mxu0 %v1325
        %2022 = vmatpush.bf16.msra.mxu0 %v1321
        %2023 = vmatpush.bf16.msra.mxu0 %v1317
        %2024 = vmatmul.bf16.gmra.mxu0 %v500
        %v2025 = vpop.f32.mrf.mxu0
        %v2026 = vadd.f32 %v2013, %v2025
        %v2027 = vpop.f32.mrf.mxu0
        %2028 = vdwg.mxu0
        %2029 = vmatpush.bf16.msra.mxu0 %v1377
        %2030 = vmatpush.bf16.msra.mxu0 %v1373
        %2031 = vmatpush.bf16.msra.mxu0 %v1369
        %2032 = vmatpush.bf16.msra.mxu0 %v1365
        %2033 = vmatpush.bf16.msra.mxu0 %v1361
        %2034 = vmatpush.bf16.msra.mxu0 %v1357
        %2035 = vmatpush.bf16.msra.mxu0 %v1353
        %2036 = vmatpush.bf16.msra.mxu0 %v1349
        %2037 = vmatmul.bf16.gmra.mxu0 %v501
        %v2038 = vpop.f32.mrf.mxu0
        %v2039 = vadd.f32 %v2026, %v2038
        %v2040 = vpop.f32.mrf.mxu0
        %2041 = vdwg.mxu0
        %2042 = vmatpush.bf16.msra.mxu0 %v1409
        %2043 = vmatpush.bf16.msra.mxu0 %v1405
        %2044 = vmatpush.bf16.msra.mxu0 %v1401
        %2045 = vmatpush.bf16.msra.mxu0 %v1397
        %2046 = vmatpush.bf16.msra.mxu0 %v1393
        %2047 = vmatpush.bf16.msra.mxu0 %v1389
        %2048 = vmatpush.bf16.msra.mxu0 %v1385
        %2049 = vmatpush.bf16.msra.mxu0 %v1381
        %2050 = vmatmul.bf16.gmra.mxu0 %v502
        %v2051 = vpop.f32.mrf.mxu0
        %v2052 = vadd.f32 %v2039, %v2051
        %v2053 = vpop.f32.mrf.mxu0
        %2054 = vdwg.mxu0
        %2055 = vmatpush.bf16.msra.mxu0 %v1441
        %2056 = vmatpush.bf16.msra.mxu0 %v1437
        %2057 = vmatpush.bf16.msra.mxu0 %v1433
        %2058 = vmatpush.bf16.msra.mxu0 %v1429
        %2059 = vmatpush.bf16.msra.mxu0 %v1425
        %2060 = vmatpush.bf16.msra.mxu0 %v1421
        %2061 = vmatpush.bf16.msra.mxu0 %v1417
        %2062 = vmatpush.bf16.msra.mxu0 %v1413
        %2063 = vmatmul.bf16.gmra.mxu0 %v503
        %v2064 = vpop.f32.mrf.mxu0
        %v2065 = vadd.f32 %v2052, %v2064
        %v2066 = vpop.f32.mrf.mxu0
        %2067 = vdwg.mxu0
        %2068 = vmatpush.bf16.msra.mxu0 %v1473
        %2069 = vmatpush.bf16.msra.mxu0 %v1469
        %2070 = vmatpush.bf16.msra.mxu0 %v1465
        %2071 = vmatpush.bf16.msra.mxu0 %v1461
        %2072 = vmatpush.bf16.msra.mxu0 %v1457
        %2073 = vmatpush.bf16.msra.mxu0 %v1453
        %2074 = vmatpush.bf16.msra.mxu0 %v1449
        %2075 = vmatpush.bf16.msra.mxu0 %v1445
        %2076 = vmatmul.bf16.gmra.mxu0 %v504
        %v2077 = vpop.f32.mrf.mxu0
        %v2078 = vadd.f32 %v2065, %v2077
        %v2079 = vpop.f32.mrf.mxu0
        %2080 = vdwg.mxu0
        %2081 = vmatpush.bf16.msra.mxu0 %v1505
        %2082 = vmatpush.bf16.msra.mxu0 %v1501
        %2083 = vmatpush.bf16.msra.mxu0 %v1497
        %2084 = vmatpush.bf16.msra.mxu0 %v1493
        %2085 = vmatpush.bf16.msra.mxu0 %v1489
        %2086 = vmatpush.bf16.msra.mxu0 %v1485
        %2087 = vmatpush.bf16.msra.mxu0 %v1481
        %2088 = vmatpush.bf16.msra.mxu0 %v1477
        %2089 = vmatmul.bf16.gmra.mxu0 %v505
        %v2090 = vpop.f32.mrf.mxu0
        %v2091 = vadd.f32 %v2078, %v2090
        %v2092 = vpop.f32.mrf.mxu0
        %2093 = vdwg.mxu0
        %2094 = vmatpush.bf16.msra.mxu0 %v1537
        %2095 = vmatpush.bf16.msra.mxu0 %v1533
        %2096 = vmatpush.bf16.msra.mxu0 %v1529
        %2097 = vmatpush.bf16.msra.mxu0 %v1525
        %2098 = vmatpush.bf16.msra.mxu0 %v1521
        %2099 = vmatpush.bf16.msra.mxu0 %v1517
        %2100 = vmatpush.bf16.msra.mxu0 %v1513
        %2101 = vmatpush.bf16.msra.mxu0 %v1509
        %2102 = vmatmul.bf16.gmra.mxu0 %v506
        %v2103 = vpop.f32.mrf.mxu0
        %v2104 = vadd.f32 %v2091, %v2103
        %v2105 = vpop.f32.mrf.mxu0
        %2106 = vdwg.mxu0
        %2107 = vmatpush.bf16.msra.mxu0 %v1314
        %2108 = vmatpush.bf16.msra.mxu0 %v1310
        %2109 = vmatpush.bf16.msra.mxu0 %v1306
        %2110 = vmatpush.bf16.msra.mxu0 %v1302
        %2111 = vmatpush.bf16.msra.mxu0 %v1298
        %2112 = vmatpush.bf16.msra.mxu0 %v1294
        %2113 = vmatpush.bf16.msra.mxu0 %v1290
        %2114 = vmatpush.bf16.msra.mxu0 %v1286
        %2115 = vmatmul.bf16.gmra.mxu0 %v499
        %v2116 = vpop.f32.mrf.mxu0
        %v2117 = vadd.f32 0.0, %v2116
        %v2118 = vpop.f32.mrf.mxu0
        %2119 = vdwg.mxu0
        %2120 = vmatpush.bf16.msra.mxu0 %v1346
        %2121 = vmatpush.bf16.msra.mxu0 %v1342
        %2122 = vmatpush.bf16.msra.mxu0 %v1338
        %2123 = vmatpush.bf16.msra.mxu0 %v1334
        %2124 = vmatpush.bf16.msra.mxu0 %v1330
        %2125 = vmatpush.bf16.msra.mxu0 %v1326
        %2126 = vmatpush.bf16.msra.mxu0 %v1322
        %2127 = vmatpush.bf16.msra.mxu0 %v1318
        %2128 = vmatmul.bf16.gmra.mxu0 %v500
        %v2129 = vpop.f32.mrf.mxu0
        %v2130 = vadd.f32 %v2117, %v2129
        %v2131 = vpop.f32.mrf.mxu0
        %2132 = vdwg.mxu0
        %2133 = vmatpush.bf16.msra.mxu0 %v1378
        %2134 = vmatpush.bf16.msra.mxu0 %v1374
        %2135 = vmatpush.bf16.msra.mxu0 %v1370
        %2136 = vmatpush.bf16.msra.mxu0 %v1366
        %2137 = vmatpush.bf16.msra.mxu0 %v1362
        %2138 = vmatpush.bf16.msra.mxu0 %v1358
        %2139 = vmatpush.bf16.msra.mxu0 %v1354
        %2140 = vmatpush.bf16.msra.mxu0 %v1350
        %2141 = vmatmul.bf16.gmra.mxu0 %v501
        %v2142 = vpop.f32.mrf.mxu0
        %v2143 = vadd.f32 %v2130, %v2142
        %v2144 = vpop.f32.mrf.mxu0
        %2145 = vdwg.mxu0
        %2146 = vmatpush.bf16.msra.mxu0 %v1410
        %2147 = vmatpush.bf16.msra.mxu0 %v1406
        %2148 = vmatpush.bf16.msra.mxu0 %v1402
        %2149 = vmatpush.bf16.msra.mxu0 %v1398
        %2150 = vmatpush.bf16.msra.mxu0 %v1394
        %2151 = vmatpush.bf16.msra.mxu0 %v1390
        %2152 = vmatpush.bf16.msra.mxu0 %v1386
        %2153 = vmatpush.bf16.msra.mxu0 %v1382
        %2154 = vmatmul.bf16.gmra.mxu0 %v502
        %v2155 = vpop.f32.mrf.mxu0
        %v2156 = vadd.f32 %v2143, %v2155
        %v2157 = vpop.f32.mrf.mxu0
        %2158 = vdwg.mxu0
        %2159 = vmatpush.bf16.msra.mxu0 %v1442
        %2160 = vmatpush.bf16.msra.mxu0 %v1438
        %2161 = vmatpush.bf16.msra.mxu0 %v1434
        %2162 = vmatpush.bf16.msra.mxu0 %v1430
        %2163 = vmatpush.bf16.msra.mxu0 %v1426
        %2164 = vmatpush.bf16.msra.mxu0 %v1422
        %2165 = vmatpush.bf16.msra.mxu0 %v1418
        %2166 = vmatpush.bf16.msra.mxu0 %v1414
        %2167 = vmatmul.bf16.gmra.mxu0 %v503
        %v2168 = vpop.f32.mrf.mxu0
        %v2169 = vadd.f32 %v2156, %v2168
        %v2170 = vpop.f32.mrf.mxu0
        %2171 = vdwg.mxu0
        %2172 = vmatpush.bf16.msra.mxu0 %v1474
        %2173 = vmatpush.bf16.msra.mxu0 %v1470
        %2174 = vmatpush.bf16.msra.mxu0 %v1466
        %2175 = vmatpush.bf16.msra.mxu0 %v1462
        %2176 = vmatpush.bf16.msra.mxu0 %v1458
        %2177 = vmatpush.bf16.msra.mxu0 %v1454
        %2178 = vmatpush.bf16.msra.mxu0 %v1450
        %2179 = vmatpush.bf16.msra.mxu0 %v1446
        %2180 = vmatmul.bf16.gmra.mxu0 %v504
        %v2181 = vpop.f32.mrf.mxu0
        %v2182 = vadd.f32 %v2169, %v2181
        %v2183 = vpop.f32.mrf.mxu0
        %2184 = vdwg.mxu0
        %2185 = vmatpush.bf16.msra.mxu0 %v1506
        %2186 = vmatpush.bf16.msra.mxu0 %v1502
        %2187 = vmatpush.bf16.msra.mxu0 %v1498
        %2188 = vmatpush.bf16.msra.mxu0 %v1494
        %2189 = vmatpush.bf16.msra.mxu0 %v1490
        %2190 = vmatpush.bf16.msra.mxu0 %v1486
        %2191 = vmatpush.bf16.msra.mxu0 %v1482
        %2192 = vmatpush.bf16.msra.mxu0 %v1478
        %2193 = vmatmul.bf16.gmra.mxu0 %v505
        %v2194 = vpop.f32.mrf.mxu0
        %v2195 = vadd.f32 %v2182, %v2194
        %v2196 = vpop.f32.mrf.mxu0
        %2197 = vdwg.mxu0
        %2198 = vmatpush.bf16.msra.mxu0 %v1538
        %2199 = vmatpush.bf16.msra.mxu0 %v1534
        %2200 = vmatpush.bf16.msra.mxu0 %v1530
        %2201 = vmatpush.bf16.msra.mxu0 %v1526
        %2202 = vmatpush.bf16.msra.mxu0 %v1522
        %2203 = vmatpush.bf16.msra.mxu0 %v1518
        %2204 = vmatpush.bf16.msra.mxu0 %v1514
        %2205 = vmatpush.bf16.msra.mxu0 %v1510
        %2206 = vmatmul.bf16.gmra.mxu0 %v506
        %v2207 = vpop.f32.mrf.mxu0
        %v2208 = vadd.f32 %v2195, %v2207
        %v2209 = vpop.f32.mrf.mxu0
        %2210 = vdwg.mxu0
        %v2211 = vmax.f32 %v1896, 0.0
        %v2212 = vmax.f32 %v2000, 0.0
        %v2213 = vmax.f32 %v2104, 0.0
        %v2214 = vmax.f32 %v2208, 0.0
        %v2215 = vld [vmem:[#allocation2] sm:$0x3]
        %v2216 = vpack.c.bf16 %v2211, %v2211
        %v2217 = vpack.c.bf16 %v2212, %v2212
        %v2218 = vpack.c.bf16 %v2213, %v2213
        %v2219 = vpack.c.bf16 %v2214, %v2214
        %v2220 = vld [vmem:[%s209] sm:$0xf]
        %v2221 = vld [vmem:[%s209 + $0x4] sm:$0xf]
        %v2222 = vld [vmem:[%s209 + $0x8] sm:$0xf]
        %v2223 = vld [vmem:[%s209 + $0xc] sm:$0xf]
        %v2224 = vld [vmem:[%s209 + $0x10] sm:$0xf]
        %v2225 = vld [vmem:[%s209 + $0x14] sm:$0xf]
        %v2226 = vld [vmem:[%s209 + $0x18] sm:$0xf]
        %v2227 = vld [vmem:[%s209 + $0x1c] sm:$0xf]
        %v2228 = vld [vmem:[%s209 + $0x20] sm:$0xf]
        %v2229 = vld [vmem:[%s209 + $0x24] sm:$0xf]
        %v2230 = vld [vmem:[%s209 + $0x28] sm:$0xf]
        %v2231 = vld [vmem:[%s209 + $0x2c] sm:$0xf]
        %v2232 = vld [vmem:[%s209 + $0x30] sm:$0xf]
        %v2233 = vld [vmem:[%s209 + $0x34] sm:$0xf]
        %v2234 = vld [vmem:[%s209 + $0x38] sm:$0xf]
        %v2235 = vld [vmem:[%s209 + $0x3c] sm:$0xf]
        %v2236 = vld [vmem:[%s209 + $0x40] sm:$0xf]
        %v2237 = vld [vmem:[%s209 + $0x44] sm:$0xf]
        %v2238 = vld [vmem:[%s209 + $0x48] sm:$0xf]
        %v2239 = vld [vmem:[%s209 + $0x4c] sm:$0xf]
        %v2240 = vld [vmem:[%s209 + $0x50] sm:$0xf]
        %v2241 = vld [vmem:[%s209 + $0x54] sm:$0xf]
        %v2242 = vld [vmem:[%s209 + $0x58] sm:$0xf]
        %v2243 = vld [vmem:[%s209 + $0x5c] sm:$0xf]
        %v2244 = vld [vmem:[%s209 + $0x60] sm:$0xf]
        %v2245 = vld [vmem:[%s209 + $0x64] sm:$0xf]
        %v2246 = vld [vmem:[%s209 + $0x68] sm:$0xf]
        %v2247 = vld [vmem:[%s209 + $0x6c] sm:$0xf]
        %v2248 = vld [vmem:[%s209 + $0x70] sm:$0xf]
        %v2249 = vld [vmem:[%s209 + $0x74] sm:$0xf]
        %v2250 = vld [vmem:[%s209 + $0x78] sm:$0xf]
        %v2251 = vld [vmem:[%s209 + $0x7c] sm:$0xf]
        %v2252 = vld [vmem:[%s209 + $0x80] sm:$0xf]
        %v2253 = vld [vmem:[%s209 + $0x84] sm:$0xf]
        %v2254 = vld [vmem:[%s209 + $0x88] sm:$0xf]
        %v2255 = vld [vmem:[%s209 + $0x8c] sm:$0xf]
        %v2256 = vld [vmem:[%s209 + $0x90] sm:$0xf]
        %v2257 = vld [vmem:[%s209 + $0x94] sm:$0xf]
        %v2258 = vld [vmem:[%s209 + $0x98] sm:$0xf]
        %v2259 = vld [vmem:[%s209 + $0x9c] sm:$0xf]
        %v2260 = vld [vmem:[%s209 + $0xa0] sm:$0xf]
        %v2261 = vld [vmem:[%s209 + $0xa4] sm:$0xf]
        %v2262 = vld [vmem:[%s209 + $0xa8] sm:$0xf]
        %v2263 = vld [vmem:[%s209 + $0xac] sm:$0xf]
        %v2264 = vld [vmem:[%s209 + $0xb0] sm:$0xf]
        %v2265 = vld [vmem:[%s209 + $0xb4] sm:$0xf]
        %v2266 = vld [vmem:[%s209 + $0xb8] sm:$0xf]
        %v2267 = vld [vmem:[%s209 + $0xbc] sm:$0xf]
        %v2268 = vld [vmem:[%s209 + $0xc0] sm:$0xf]
        %v2269 = vld [vmem:[%s209 + $0xc4] sm:$0xf]
        %v2270 = vld [vmem:[%s209 + $0xc8] sm:$0xf]
        %v2271 = vld [vmem:[%s209 + $0xcc] sm:$0xf]
        %v2272 = vld [vmem:[%s209 + $0xd0] sm:$0xf]
        %v2273 = vld [vmem:[%s209 + $0xd4] sm:$0xf]
        %v2274 = vld [vmem:[%s209 + $0xd8] sm:$0xf]
        %v2275 = vld [vmem:[%s209 + $0xdc] sm:$0xf]
        %v2276 = vld [vmem:[%s209 + $0xe0] sm:$0xf]
        %v2277 = vld [vmem:[%s209 + $0xe4] sm:$0xf]
        %v2278 = vld [vmem:[%s209 + $0xe8] sm:$0xf]
        %v2279 = vld [vmem:[%s209 + $0xec] sm:$0xf]
        %v2280 = vld [vmem:[%s209 + $0xf0] sm:$0xf]
        %v2281 = vld [vmem:[%s209 + $0xf4] sm:$0xf]
        %v2282 = vld [vmem:[%s209 + $0xf8] sm:$0xf]
        %v2283 = vld [vmem:[%s209 + $0xfc] sm:$0xf]
        %v2348 = vunpack.c.l.b16 %v2220
        %v2349 = vunpack.c.l.b16 %v2221
        %v2350 = vunpack.c.l.b16 %v2222
        %v2351 = vunpack.c.l.b16 %v2223
        %v2352 = vunpack.c.l.b16 %v2224
        %v2353 = vunpack.c.l.b16 %v2225
        %v2354 = vunpack.c.l.b16 %v2226
        %v2355 = vunpack.c.l.b16 %v2227
        %v2356 = vunpack.c.l.b16 %v2228
        %v2357 = vunpack.c.l.b16 %v2229
        %v2358 = vunpack.c.l.b16 %v2230
        %v2359 = vunpack.c.l.b16 %v2231
        %v2360 = vunpack.c.l.b16 %v2232
        %v2361 = vunpack.c.l.b16 %v2233
        %v2362 = vunpack.c.l.b16 %v2234
        %v2363 = vunpack.c.l.b16 %v2235
        %v2364 = vunpack.c.l.b16 %v2236
        %v2365 = vunpack.c.l.b16 %v2237
        %v2366 = vunpack.c.l.b16 %v2238
        %v2367 = vunpack.c.l.b16 %v2239
        %v2368 = vunpack.c.l.b16 %v2240
        %v2369 = vunpack.c.l.b16 %v2241
        %v2370 = vunpack.c.l.b16 %v2242
        %v2371 = vunpack.c.l.b16 %v2243
        %v2372 = vunpack.c.l.b16 %v2244
        %v2373 = vunpack.c.l.b16 %v2245
        %v2374 = vunpack.c.l.b16 %v2246
        %v2375 = vunpack.c.l.b16 %v2247
        %v2376 = vunpack.c.l.b16 %v2248
        %v2377 = vunpack.c.l.b16 %v2249
        %v2378 = vunpack.c.l.b16 %v2250
        %v2379 = vunpack.c.l.b16 %v2251
        %v2380 = vunpack.c.l.b16 %v2252
        %v2381 = vunpack.c.l.b16 %v2253
        %v2382 = vunpack.c.l.b16 %v2254
        %v2383 = vunpack.c.l.b16 %v2255
        %v2384 = vunpack.c.l.b16 %v2256
        %v2385 = vunpack.c.l.b16 %v2257
        %v2386 = vunpack.c.l.b16 %v2258
        %v2387 = vunpack.c.l.b16 %v2259
        %v2388 = vunpack.c.l.b16 %v2260
        %v2389 = vunpack.c.l.b16 %v2261
        %v2390 = vunpack.c.l.b16 %v2262
        %v2391 = vunpack.c.l.b16 %v2263
        %v2392 = vunpack.c.l.b16 %v2264
        %v2393 = vunpack.c.l.b16 %v2265
        %v2394 = vunpack.c.l.b16 %v2266
        %v2395 = vunpack.c.l.b16 %v2267
        %v2396 = vunpack.c.l.b16 %v2268
        %v2397 = vunpack.c.l.b16 %v2269
        %v2398 = vunpack.c.l.b16 %v2270
        %v2399 = vunpack.c.l.b16 %v2271
        %v2400 = vunpack.c.l.b16 %v2272
        %v2401 = vunpack.c.l.b16 %v2273
        %v2402 = vunpack.c.l.b16 %v2274
        %v2403 = vunpack.c.l.b16 %v2275
        %v2404 = vunpack.c.l.b16 %v2276
        %v2405 = vunpack.c.l.b16 %v2277
        %v2406 = vunpack.c.l.b16 %v2278
        %v2407 = vunpack.c.l.b16 %v2279
        %v2408 = vunpack.c.l.b16 %v2280
        %v2409 = vunpack.c.l.b16 %v2281
        %v2410 = vunpack.c.l.b16 %v2282
        %v2411 = vunpack.c.l.b16 %v2283
        %v2412 = vpack.c.b16 %v2349, %v2348
        %v2413 = vpack.c.b16 %v2351, %v2350
        %v2414 = vpack.c.b16 %v2353, %v2352
        %v2415 = vpack.c.b16 %v2355, %v2354
        %v2416 = vpack.c.b16 %v2357, %v2356
        %v2417 = vpack.c.b16 %v2359, %v2358
        %v2418 = vpack.c.b16 %v2361, %v2360
        %v2419 = vpack.c.b16 %v2363, %v2362
        %v2420 = vpack.c.b16 %v2365, %v2364
        %v2421 = vpack.c.b16 %v2367, %v2366
        %v2422 = vpack.c.b16 %v2369, %v2368
        %v2423 = vpack.c.b16 %v2371, %v2370
        %v2424 = vpack.c.b16 %v2373, %v2372
        %v2425 = vpack.c.b16 %v2375, %v2374
        %v2426 = vpack.c.b16 %v2377, %v2376
        %v2427 = vpack.c.b16 %v2379, %v2378
        %v2428 = vpack.c.b16 %v2381, %v2380
        %v2429 = vpack.c.b16 %v2383, %v2382
        %v2430 = vpack.c.b16 %v2385, %v2384
        %v2431 = vpack.c.b16 %v2387, %v2386
        %v2432 = vpack.c.b16 %v2389, %v2388
        %v2433 = vpack.c.b16 %v2391, %v2390
        %v2434 = vpack.c.b16 %v2393, %v2392
        %v2435 = vpack.c.b16 %v2395, %v2394
        %v2436 = vpack.c.b16 %v2397, %v2396
        %v2437 = vpack.c.b16 %v2399, %v2398
        %v2438 = vpack.c.b16 %v2401, %v2400
        %v2439 = vpack.c.b16 %v2403, %v2402
        %v2440 = vpack.c.b16 %v2405, %v2404
        %v2441 = vpack.c.b16 %v2407, %v2406
        %v2442 = vpack.c.b16 %v2409, %v2408
        %v2443 = vpack.c.b16 %v2411, %v2410
        %2476 = vmatpush.bf16.msra.mxu0 %v2419
        %2477 = vmatpush.bf16.msra.mxu0 %v2418
        %2478 = vmatpush.bf16.msra.mxu0 %v2417
        %2479 = vmatpush.bf16.msra.mxu0 %v2416
        %2480 = vmatpush.bf16.msra.mxu0 %v2415
        %2481 = vmatpush.bf16.msra.mxu0 %v2414
        %2482 = vmatpush.bf16.msra.mxu0 %v2413
        %2483 = vmatpush.bf16.msra.mxu0 %v2412
        %2484 = vmatmul.bf16.gmra.mxu0 %v2216
        %v2485 = vpop.f32.mrf.mxu0
        %v2486 = vadd.f32 0.0, %v2485
        %v2487 = vpop.f32.mrf.mxu0
        %2488 = vdwg.mxu0
        %2489 = vmatpush.bf16.msra.mxu0 %v2427
        %2490 = vmatpush.bf16.msra.mxu0 %v2426
        %2491 = vmatpush.bf16.msra.mxu0 %v2425
        %2492 = vmatpush.bf16.msra.mxu0 %v2424
        %2493 = vmatpush.bf16.msra.mxu0 %v2423
        %2494 = vmatpush.bf16.msra.mxu0 %v2422
        %2495 = vmatpush.bf16.msra.mxu0 %v2421
        %2496 = vmatpush.bf16.msra.mxu0 %v2420
        %2497 = vmatmul.bf16.gmra.mxu0 %v2217
        %v2498 = vpop.f32.mrf.mxu0
        %v2499 = vadd.f32 %v2486, %v2498
        %v2500 = vpop.f32.mrf.mxu0
        %2501 = vdwg.mxu0
        %2502 = vmatpush.bf16.msra.mxu0 %v2435
        %2503 = vmatpush.bf16.msra.mxu0 %v2434
        %2504 = vmatpush.bf16.msra.mxu0 %v2433
        %2505 = vmatpush.bf16.msra.mxu0 %v2432
        %2506 = vmatpush.bf16.msra.mxu0 %v2431
        %2507 = vmatpush.bf16.msra.mxu0 %v2430
        %2508 = vmatpush.bf16.msra.mxu0 %v2429
        %2509 = vmatpush.bf16.msra.mxu0 %v2428
        %2510 = vmatmul.bf16.gmra.mxu0 %v2218
        %v2511 = vpop.f32.mrf.mxu0
        %v2512 = vadd.f32 %v2499, %v2511
        %v2513 = vpop.f32.mrf.mxu0
        %2514 = vdwg.mxu0
        %2515 = vmatpush.bf16.msra.mxu0 %v2443
        %2516 = vmatpush.bf16.msra.mxu0 %v2442
        %2517 = vmatpush.bf16.msra.mxu0 %v2441
        %2518 = vmatpush.bf16.msra.mxu0 %v2440
        %2519 = vmatpush.bf16.msra.mxu0 %v2439
        %2520 = vmatpush.bf16.msra.mxu0 %v2438
        %2521 = vmatpush.bf16.msra.mxu0 %v2437
        %2522 = vmatpush.bf16.msra.mxu0 %v2436
        %2523 = vmatmul.bf16.gmra.mxu0 %v2219
        %v2524 = vpop.f32.mrf.mxu0
        %v2525 = vadd.f32 %v2512, %v2524
        %v2526 = vpop.f32.mrf.mxu0
        %2527 = vdwg.mxu0
        %v2528 = vadd.f32 %v2215, %v2525
        %2529 = vst [vmem:[#allocation2] sm:$0x3] %v2528
        %p2530 = scmp.eq.s32.totalorder %s19, 3
        // Predicated region
        $region49: #{tpu_custom_call.1} parent=31 // pred_check
          %p2531 = pneg %p2530
        $region50: #{tpu_custom_call.1} parent=31 // pred_check_branch
          %2533 = sbr.rel (%p2531) target = $region52
        $region51: #{tpu_custom_call.1} parent=31 // pred_region
          %v2534 = vld [vmem:[#allocation2] sm:$0x3]
          %2535 = vst [vmem:[#allocation9] sm:$0x3] %v2534
        $region52: #{tpu_custom_call.1} parent=31 // pred_fallthru
          _
        // Predicated region
        $region53: #{tpu_custom_call.1} parent=31 // pred_check
          %p2536 = pneg %p105
        $region54: #{tpu_custom_call.1} parent=31 // pred_check_branch
          %2538 = sbr.rel (%p2536) target = $region56
        $region55: #{tpu_custom_call.1} parent=31 // pred_region
          %2540 = vsyncadd [#allocation5], 0
          %s2542 = sshll.u32 [#allocation9], 4
          %s2543 = int_to_ptr.vmem [resolvable:$true] %s2542
          %s2544 = sshll.u32 %s3, 4
          %s2545 = int_to_ptr.hbm [resolvable:$true] %s2544
          %2547 = dma.vmem_to_hbm [thread:$0]  %s2543, 32, %s2545, [#allocation5]
        $region56: #{tpu_custom_call.1} parent=31 // pred_fallthru
          _
        // Predicated region
        $region57: #{tpu_custom_call.1} parent=31 // pred_check
          %p2548 = pneg %p105
        $region58: #{tpu_custom_call.1} parent=31 // pred_check_branch
          %2550 = sbr.rel (%p2548) target = $region60
        $region59: #{tpu_custom_call.1} parent=31 // pred_region
          %2552 = dma.done [#allocation5], 32
        $region60: #{tpu_custom_call.1} parent=31 // pred_fallthru
          _
      $region32: #{tpu_custom_call.1} parent=5 // pred_fallthru
        _
      %p2553 = scmp.le.s32.totalorder 2, %s14
      // Predicated region
      $region61: #{tpu_custom_call.1} parent=5 // pred_check
        %p2554 = pneg %p2553
      $region62: #{tpu_custom_call.1} parent=5 // pred_check_branch
        %2556 = sbr.rel (%p2554) target = $region64
      $region63: #{tpu_custom_call.1} parent=5 // pred_region
        %s2557 = ssub.s32 %s14, 2
      $region64: #{tpu_custom_call.1} parent=5 // pred_fallthru
        _
    $region6: #{tpu_custom_call.1} parent=1 // loop_footer
      %s18 = sadd.s32 1, %s14
    $region7: #{tpu_custom_call.1} parent=1 // loop_footer_branch
      %13 = sbr.rel target = $region3
    $region8: #{tpu_custom_call.1} parent=1 // loop_exit
      _
    %2558 = vsyncpa [#allocation4], 1
    %s2559 = scalar_lea.sflag [#allocation4], 1
    %2560 = vsyncpa %s2559, 1
    %2561 = vsyncpa [#allocation7], 1
    %s2562 = scalar_lea.sflag [#allocation7], 1
    %2563 = vsyncpa %s2562, 1
    %2564 = vsyncpa [#allocation5], 1
    %s2565 = scalar_lea.sflag [#allocation5], 1
    %2566 = vsyncpa %s2565, 1

</llo_original>
